<compile_context>
chip_gen: v5e
topology: v5e:2x2
jax: 0.10.0
libtpu: 0.0.40
codegen_flags: <defaults>
</compile_context>

<pallas_src>
import math

import numpy as np

import jax
import jax.numpy as jnp
from jax.experimental import pallas as pl
from jax.experimental.pallas import tpu as pltpu


# ---------------------------------------------------------------------------
# same_padding (mirrors RLlib's helper used by TorchCNN)
# ---------------------------------------------------------------------------
def same_padding(in_size, filter_size, stride_size):
    in_width, in_height = in_size
    if isinstance(filter_size, int):
        filter_width, filter_height = filter_size, filter_size
    else:
        filter_width, filter_height = filter_size
    if isinstance(stride_size, (int, float)):
        stride_width, stride_height = int(stride_size), int(stride_size)
    else:
        stride_width, stride_height = int(stride_size[0]), int(stride_size[1])

    out_width = int(math.ceil(in_width / stride_width))
    out_height = int(math.ceil(in_height / stride_height))

    pad_along_width = max(int((out_width - 1) * stride_width + filter_width - in_width), 0)
    pad_along_height = max(int((out_height - 1) * stride_height + filter_height - in_height), 0)

    pad_left = pad_along_width // 2
    pad_right = pad_along_width - pad_left
    pad_top = pad_along_height // 2
    pad_bottom = pad_along_height - pad_top
    padding = (pad_left, pad_right, pad_top, pad_bottom)     # nn.ZeroPad2d order
    return padding, [out_width, out_height]


# ---------------------------------------------------------------------------
# Synthetic, deterministic TorchCNN parameters (weights stored HWIO)
# ---------------------------------------------------------------------------
def make_torch_cnn_params(input_dims, cnn_filter_specifiers, key):
    width, height, in_depth = input_dims
    in_w, in_h = width, height
    layers = []
    for out_depth, kernel, stride in cnn_filter_specifiers:
        if isinstance(kernel, int):
            kw = kh = int(kernel)
        else:
            kw, kh = int(kernel[0]), int(kernel[1])
        s = int(stride)
        padding, out_size = same_padding([in_w, in_h], kernel, stride)
        out_w, out_h = out_size
        key, wk, bk = jax.random.split(key, 3)
        fan_in = kh * kw * in_depth
        w_hwio = jax.random.normal(wk, (kh, kw, in_depth, out_depth), jnp.float32)
        w_hwio = w_hwio * (1.0 / math.sqrt(fan_in))
        b = 0.01 * jax.random.normal(bk, (out_depth,), jnp.float32)
        layers.append(dict(
            w_hwio=w_hwio, b=b, stride=s, padding=padding, kh=kh, kw=kw,
            in_hw=(in_h, in_w), out_hw=(out_h, out_w),
            in_depth=in_depth, out_depth=out_depth,
        ))
        in_w, in_h, in_depth = out_w, out_h, out_depth
    return layers


# ---------------------------------------------------------------------------
# Per-tap 0/1 gather matrices (fold zero-padding + stride-2 subsample + shift)
# ---------------------------------------------------------------------------
def _tap_gather_matrices(h_in, w_in, h_out, w_out, kh, kw, stride, padding):
    """G[k] with shape [h_in*w_in, h_out*w_out] so that
    (act[C, h_in*w_in] @ G[k])[c, ho*w_out + wo] equals the zero-padded input
    at (ho*stride + i - pad_top, wo*stride + j - pad_left), with k = i*kw + j."""
    pad_left, _pad_right, pad_top, _pad_bottom = padding
    g = np.zeros((kh * kw, h_in * w_in, h_out * w_out), np.float32)
    for i in range(kh):
        for j in range(kw):
            k = i * kw + j
            for ho in range(h_out):
                hi = ho * stride + i - pad_top
                if hi < 0 or hi >= h_in:
                    continue
                for wo in range(w_out):
                    wi = wo * stride + j - pad_left
                    if wi < 0 or wi >= w_in:
                        continue
                    g[k, hi * w_in + wi, ho * w_out + wo] = 1.0
    return g


def build_kernel_constants(layers):
    """Per layer: (gather [taps, S_in, S_out], weights [taps, C_out, C_in],
    bias broadcast to [C_out, S_out])."""
    consts = []
    for lp in layers:
        kh, kw, s = lp["kh"], lp["kw"], lp["stride"]
        h_in, w_in = lp["in_hw"]
        h_out, w_out = lp["out_hw"]
        c_in, c_out = lp["in_depth"], lp["out_depth"]
        g = _tap_gather_matrices(h_in, w_in, h_out, w_out, kh, kw, s, lp["padding"])
        w_taps = np.transpose(
            np.asarray(lp["w_hwio"]).reshape(kh * kw, c_in, c_out), (0, 2, 1))
        b_full = np.broadcast_to(
            np.asarray(lp["b"]).reshape(c_out, 1), (c_out, h_out * w_out)).copy()
        consts.append((jnp.asarray(g), jnp.asarray(w_taps), jnp.asarray(b_full)))
    return consts


# ---------------------------------------------------------------------------
# Fused kernel: all conv layers for one batch element per grid step
# ---------------------------------------------------------------------------
def _make_fused_cnn_kernel(num_layers):
    def kernel(*refs):
        x_ref = refs[0]                        # [1, C0, S0]
        o_ref = refs[1 + 3 * num_layers]       # [1, C_last, S_last]
        act = x_ref[0]                         # [C_in, S_in], channels on sublanes
        for l in range(num_layers):
            g_ref = refs[1 + 3 * l]            # [taps, S_in, S_out]
            w_ref = refs[2 + 3 * l]            # [taps, C_out, C_in]
            b_ref = refs[3 + 3 * l]            # [C_out, S_out]
            taps = g_ref.shape[0]
            c_out = w_ref.shape[1]
            s_out = g_ref.shape[2]
            acc = jnp.zeros((c_out, s_out), jnp.float32)
            for k in range(taps):              # static unroll over KH*KW taps
                shifted = jnp.dot(act, g_ref[k],
                                  preferred_element_type=jnp.float32)      # [C_in, S_out]
                acc = acc + jnp.dot(w_ref[k], shifted,
                                    preferred_element_type=jnp.float32)    # [C_out, S_out]
            # TODO(synk): cnn_use_layernorm=True (nn.LayerNorm over (C,H,W)) not
            # implemented; the module default is False.
            act = jnp.maximum(acc + b_ref[...], 0.0)                        # bias + ReLU
        o_ref[0] = act
    return kernel


def torch_cnn_forward(inputs, consts):
    """inputs: [B, H, W, C] channels-last (what TorchCNN.forward receives).
    Returns [B, C_out*H_out*W_out] in torch.flatten(NCHW, start_dim=1) order."""
    x = inputs.astype(jnp.float32)
    B, H, W, C = x.shape
    s0 = H * W
    # Mirror the module's permute(0, 3, 1, 2); row-major flatten of (H, W).
    x_t = jnp.transpose(x, (0, 3, 1, 2)).reshape(B, C, s0)

    num_layers = len(consts)
    c_last, s_last = consts[-1][2].shape

    in_specs = [pl.BlockSpec((1, C, s0), lambda b: (b, 0, 0))]
    operands = [x_t]
    for g, w_t, b_full in consts:
        in_specs.append(pl.BlockSpec(g.shape, lambda b: (0, 0, 0)))
        in_specs.append(pl.BlockSpec(w_t.shape, lambda b: (0, 0, 0)))
        in_specs.append(pl.BlockSpec(b_full.shape, lambda b: (0, 0)))
        operands.extend([g, w_t, b_full])

    out = pl.pallas_call(
        _make_fused_cnn_kernel(num_layers),
        out_shape=jax.ShapeDtypeStruct((B, c_last, s_last), jnp.float32),
        grid=(B,),
        in_specs=in_specs,
        out_specs=pl.BlockSpec((1, c_last, s_last), lambda b: (b, 0, 0)),
        compiler_params=pltpu.CompilerParams(dimension_semantics=("parallel",)),
    )(*operands)
    # [B, C, H*W] -> [B, C*H*W]: zero-cost row-major reshape, already in the
    # torch.flatten(NCHW) element order.
    return out.reshape(B, c_last * s_last)


# ---------------------------------------------------------------------------
# Pure-JAX reference (XLA conv) for correctness checking
# ---------------------------------------------------------------------------
def reference_forward(inputs, layers):
    y = inputs.astype(jnp.float32)
    for lp in layers:
        p_l, p_r, p_t, p_b = lp["padding"]
        s = lp["stride"]
        y = jnp.pad(y, ((0, 0), (p_t, p_b), (p_l, p_r), (0, 0)))
        y = jax.lax.conv_general_dilated(
            y, lp["w_hwio"], window_strides=(s, s), padding="VALID",
            dimension_numbers=("NHWC", "HWIO", "NHWC"))
        y = jnp.maximum(y + lp["b"], 0.0)
    B = y.shape[0]
    return jnp.transpose(y, (0, 3, 1, 2)).reshape(B, -1)


if __name__ == "__main__":
    # Shapes implied by the module: 16x16x4 image, two conv layers (8, 16 filters).
    input_dims = (16, 16, 4)                         # (width, height, depth)
    cnn_filter_specifiers = [[8, 3, 2], [16, 3, 2]]
    batch = 2

    key = jax.random.PRNGKey(0)
    key, xk = jax.random.split(key)
    x = jax.random.normal(
        xk, (batch, input_dims[1], input_dims[0], input_dims[2]), jnp.float32)  # [B, H, W, C]

    layers = make_torch_cnn_params(input_dims, cnn_filter_specifiers, key)
    consts = build_kernel_constants(layers)

    out = torch_cnn_forward(x, consts)
    out = jax.block_until_ready(out)

    # 16x16 -> 8x8 -> 4x4 spatial, 16 output filters -> [B, 256]
    assert out.shape == (batch, 16 * 4 * 4), out.shape

    ref = jax.block_until_ready(reference_forward(x, layers))
    np.testing.assert_allclose(np.asarray(out), np.asarray(ref), rtol=5e-2, atol=5e-2)

    print("KERNEL_OK")
</pallas_src>

<mosaic_0001>
module attributes {stable_mosaic.version = 11 : i64} {
  func.func @kernel(%arg0: i32, %arg1: memref<1x4x256xf32, #tpu.memory_space<vmem>>, %arg2: memref<9x256x64xf32, #tpu.memory_space<vmem>>, %arg3: memref<9x8x4xf32, #tpu.memory_space<vmem>>, %arg4: memref<8x64xf32, #tpu.memory_space<vmem>>, %arg5: memref<9x64x16xf32, #tpu.memory_space<vmem>>, %arg6: memref<9x16x8xf32, #tpu.memory_space<vmem>>, %arg7: memref<16x16xf32, #tpu.memory_space<vmem>>, %arg8: memref<1x16x16xf32, #tpu.memory_space<vmem>>) attributes {dimension_semantics = [#tpu.dimension_semantics<parallel>], iteration_bounds = array<i64: 2>, scalar_prefetch = 0 : i64, scratch_operands = 0 : i64, tpu.core_type = #tpu.core_type<tc>, window_params = [{transform_indices = @transform_0, window_bounds = array<i64: 1, 4, 256>}, {pipeline_mode = #tpu.pipeline_mode<synchronous>, transform_indices = @transform_1, window_bounds = array<i64: 9, 256, 64>}, {pipeline_mode = #tpu.pipeline_mode<synchronous>, transform_indices = @transform_2, window_bounds = array<i64: 9, 8, 4>}, {pipeline_mode = #tpu.pipeline_mode<synchronous>, transform_indices = @transform_3, window_bounds = array<i64: 8, 64>}, {pipeline_mode = #tpu.pipeline_mode<synchronous>, transform_indices = @transform_4, window_bounds = array<i64: 9, 64, 16>}, {pipeline_mode = #tpu.pipeline_mode<synchronous>, transform_indices = @transform_5, window_bounds = array<i64: 9, 16, 8>}, {pipeline_mode = #tpu.pipeline_mode<synchronous>, transform_indices = @transform_6, window_bounds = array<i64: 16, 16>}, {transform_indices = @transform_7, window_bounds = array<i64: 1, 16, 16>}]} {
    %c0 = arith.constant 0 : index
    %c0_0 = arith.constant 0 : index
    %c0_1 = arith.constant 0 : index
    %0 = vector.load %arg1[%c0, %c0_0, %c0_1] : memref<1x4x256xf32, #tpu.memory_space<vmem>>, vector<1x4x256xf32>
    %1 = vector.shape_cast %0 : vector<1x4x256xf32> to vector<4x256xf32>
    %cst = arith.constant 0.000000e+00 : f32
    %2 = vector.broadcast %cst : f32 to vector<8x64xf32>
    %c0_2 = arith.constant 0 : index
    %c0_3 = arith.constant 0 : index
    %c0_4 = arith.constant 0 : index
    %3 = vector.load %arg2[%c0_2, %c0_3, %c0_4] : memref<9x256x64xf32, #tpu.memory_space<vmem>>, vector<1x256x64xf32>
    %4 = vector.shape_cast %3 : vector<1x256x64xf32> to vector<256x64xf32>
    %cst_5 = arith.constant dense<0.000000e+00> : vector<4x64xf32>
    %5 = tpu.matmul %1, %4, %cst_5 {dimension_numbers = #tpu.dot_dimension_numbers<[1], [0], [0], [1], [0, 0, 1, 1], [], []>} : vector<4x256xf32>, vector<256x64xf32>, vector<4x64xf32> -> vector<4x64xf32>
    %c0_6 = arith.constant 0 : index
    %c0_7 = arith.constant 0 : index
    %c0_8 = arith.constant 0 : index
    %6 = vector.load %arg3[%c0_6, %c0_7, %c0_8] : memref<9x8x4xf32, #tpu.memory_space<vmem>>, vector<1x8x4xf32>
    %7 = vector.shape_cast %6 : vector<1x8x4xf32> to vector<8x4xf32>
    %cst_9 = arith.constant dense<0.000000e+00> : vector<8x64xf32>
    %8 = tpu.matmul %7, %5, %cst_9 {dimension_numbers = #tpu.dot_dimension_numbers<[1], [0], [0], [1], [0, 0, 1, 1], [], []>} : vector<8x4xf32>, vector<4x64xf32>, vector<8x64xf32> -> vector<8x64xf32>
    %9 = arith.addf %2, %8 : vector<8x64xf32>
    %c1 = arith.constant 1 : index
    %c0_10 = arith.constant 0 : index
    %c0_11 = arith.constant 0 : index
    %10 = vector.load %arg2[%c1, %c0_10, %c0_11] : memref<9x256x64xf32, #tpu.memory_space<vmem>>, vector<1x256x64xf32>
    %11 = vector.shape_cast %10 : vector<1x256x64xf32> to vector<256x64xf32>
    %cst_12 = arith.constant dense<0.000000e+00> : vector<4x64xf32>
    %12 = tpu.matmul %1, %11, %cst_12 {dimension_numbers = #tpu.dot_dimension_numbers<[1], [0], [0], [1], [0, 0, 1, 1], [], []>} : vector<4x256xf32>, vector<256x64xf32>, vector<4x64xf32> -> vector<4x64xf32>
    %c1_13 = arith.constant 1 : index
    %c0_14 = arith.constant 0 : index
    %c0_15 = arith.constant 0 : index
    %13 = vector.load %arg3[%c1_13, %c0_14, %c0_15] : memref<9x8x4xf32, #tpu.memory_space<vmem>>, vector<1x8x4xf32>
    %14 = vector.shape_cast %13 : vector<1x8x4xf32> to vector<8x4xf32>
    %cst_16 = arith.constant dense<0.000000e+00> : vector<8x64xf32>
    %15 = tpu.matmul %14, %12, %cst_16 {dimension_numbers = #tpu.dot_dimension_numbers<[1], [0], [0], [1], [0, 0, 1, 1], [], []>} : vector<8x4xf32>, vector<4x64xf32>, vector<8x64xf32> -> vector<8x64xf32>
    %16 = arith.addf %9, %15 : vector<8x64xf32>
    %c2 = arith.constant 2 : index
    %c0_17 = arith.constant 0 : index
    %c0_18 = arith.constant 0 : index
    %17 = vector.load %arg2[%c2, %c0_17, %c0_18] : memref<9x256x64xf32, #tpu.memory_space<vmem>>, vector<1x256x64xf32>
    %18 = vector.shape_cast %17 : vector<1x256x64xf32> to vector<256x64xf32>
    %cst_19 = arith.constant dense<0.000000e+00> : vector<4x64xf32>
    %19 = tpu.matmul %1, %18, %cst_19 {dimension_numbers = #tpu.dot_dimension_numbers<[1], [0], [0], [1], [0, 0, 1, 1], [], []>} : vector<4x256xf32>, vector<256x64xf32>, vector<4x64xf32> -> vector<4x64xf32>
    %c2_20 = arith.constant 2 : index
    %c0_21 = arith.constant 0 : index
    %c0_22 = arith.constant 0 : index
    %20 = vector.load %arg3[%c2_20, %c0_21, %c0_22] : memref<9x8x4xf32, #tpu.memory_space<vmem>>, vector<1x8x4xf32>
    %21 = vector.shape_cast %20 : vector<1x8x4xf32> to vector<8x4xf32>
    %cst_23 = arith.constant dense<0.000000e+00> : vector<8x64xf32>
    %22 = tpu.matmul %21, %19, %cst_23 {dimension_numbers = #tpu.dot_dimension_numbers<[1], [0], [0], [1], [0, 0, 1, 1], [], []>} : vector<8x4xf32>, vector<4x64xf32>, vector<8x64xf32> -> vector<8x64xf32>
    %23 = arith.addf %16, %22 : vector<8x64xf32>
    %c3 = arith.constant 3 : index
    %c0_24 = arith.constant 0 : index
    %c0_25 = arith.constant 0 : index
    %24 = vector.load %arg2[%c3, %c0_24, %c0_25] : memref<9x256x64xf32, #tpu.memory_space<vmem>>, vector<1x256x64xf32>
    %25 = vector.shape_cast %24 : vector<1x256x64xf32> to vector<256x64xf32>
    %cst_26 = arith.constant dense<0.000000e+00> : vector<4x64xf32>
    %26 = tpu.matmul %1, %25, %cst_26 {dimension_numbers = #tpu.dot_dimension_numbers<[1], [0], [0], [1], [0, 0, 1, 1], [], []>} : vector<4x256xf32>, vector<256x64xf32>, vector<4x64xf32> -> vector<4x64xf32>
    %c3_27 = arith.constant 3 : index
    %c0_28 = arith.constant 0 : index
    %c0_29 = arith.constant 0 : index
    %27 = vector.load %arg3[%c3_27, %c0_28, %c0_29] : memref<9x8x4xf32, #tpu.memory_space<vmem>>, vector<1x8x4xf32>
    %28 = vector.shape_cast %27 : vector<1x8x4xf32> to vector<8x4xf32>
    %cst_30 = arith.constant dense<0.000000e+00> : vector<8x64xf32>
    %29 = tpu.matmul %28, %26, %cst_30 {dimension_numbers = #tpu.dot_dimension_numbers<[1], [0], [0], [1], [0, 0, 1, 1], [], []>} : vector<8x4xf32>, vector<4x64xf32>, vector<8x64xf32> -> vector<8x64xf32>
    %30 = arith.addf %23, %29 : vector<8x64xf32>
    %c4 = arith.constant 4 : index
    %c0_31 = arith.constant 0 : index
    %c0_32 = arith.constant 0 : index
    %31 = vector.load %arg2[%c4, %c0_31, %c0_32] : memref<9x256x64xf32, #tpu.memory_space<vmem>>, vector<1x256x64xf32>
    %32 = vector.shape_cast %31 : vector<1x256x64xf32> to vector<256x64xf32>
    %cst_33 = arith.constant dense<0.000000e+00> : vector<4x64xf32>
    %33 = tpu.matmul %1, %32, %cst_33 {dimension_numbers = #tpu.dot_dimension_numbers<[1], [0], [0], [1], [0, 0, 1, 1], [], []>} : vector<4x256xf32>, vector<256x64xf32>, vector<4x64xf32> -> vector<4x64xf32>
    %c4_34 = arith.constant 4 : index
    %c0_35 = arith.constant 0 : index
    %c0_36 = arith.constant 0 : index
    %34 = vector.load %arg3[%c4_34, %c0_35, %c0_36] : memref<9x8x4xf32, #tpu.memory_space<vmem>>, vector<1x8x4xf32>
    %35 = vector.shape_cast %34 : vector<1x8x4xf32> to vector<8x4xf32>
    %cst_37 = arith.constant dense<0.000000e+00> : vector<8x64xf32>
    %36 = tpu.matmul %35, %33, %cst_37 {dimension_numbers = #tpu.dot_dimension_numbers<[1], [0], [0], [1], [0, 0, 1, 1], [], []>} : vector<8x4xf32>, vector<4x64xf32>, vector<8x64xf32> -> vector<8x64xf32>
    %37 = arith.addf %30, %36 : vector<8x64xf32>
    %c5 = arith.constant 5 : index
    %c0_38 = arith.constant 0 : index
    %c0_39 = arith.constant 0 : index
    %38 = vector.load %arg2[%c5, %c0_38, %c0_39] : memref<9x256x64xf32, #tpu.memory_space<vmem>>, vector<1x256x64xf32>
    %39 = vector.shape_cast %38 : vector<1x256x64xf32> to vector<256x64xf32>
    %cst_40 = arith.constant dense<0.000000e+00> : vector<4x64xf32>
    %40 = tpu.matmul %1, %39, %cst_40 {dimension_numbers = #tpu.dot_dimension_numbers<[1], [0], [0], [1], [0, 0, 1, 1], [], []>} : vector<4x256xf32>, vector<256x64xf32>, vector<4x64xf32> -> vector<4x64xf32>
    %c5_41 = arith.constant 5 : index
    %c0_42 = arith.constant 0 : index
    %c0_43 = arith.constant 0 : index
    %41 = vector.load %arg3[%c5_41, %c0_42, %c0_43] : memref<9x8x4xf32, #tpu.memory_space<vmem>>, vector<1x8x4xf32>
    %42 = vector.shape_cast %41 : vector<1x8x4xf32> to vector<8x4xf32>
    %cst_44 = arith.constant dense<0.000000e+00> : vector<8x64xf32>
    %43 = tpu.matmul %42, %40, %cst_44 {dimension_numbers = #tpu.dot_dimension_numbers<[1], [0], [0], [1], [0, 0, 1, 1], [], []>} : vector<8x4xf32>, vector<4x64xf32>, vector<8x64xf32> -> vector<8x64xf32>
    %44 = arith.addf %37, %43 : vector<8x64xf32>
    %c6 = arith.constant 6 : index
    %c0_45 = arith.constant 0 : index
    %c0_46 = arith.constant 0 : index
    %45 = vector.load %arg2[%c6, %c0_45, %c0_46] : memref<9x256x64xf32, #tpu.memory_space<vmem>>, vector<1x256x64xf32>
    %46 = vector.shape_cast %45 : vector<1x256x64xf32> to vector<256x64xf32>
    %cst_47 = arith.constant dense<0.000000e+00> : vector<4x64xf32>
    %47 = tpu.matmul %1, %46, %cst_47 {dimension_numbers = #tpu.dot_dimension_numbers<[1], [0], [0], [1], [0, 0, 1, 1], [], []>} : vector<4x256xf32>, vector<256x64xf32>, vector<4x64xf32> -> vector<4x64xf32>
    %c6_48 = arith.constant 6 : index
    %c0_49 = arith.constant 0 : index
    %c0_50 = arith.constant 0 : index
    %48 = vector.load %arg3[%c6_48, %c0_49, %c0_50] : memref<9x8x4xf32, #tpu.memory_space<vmem>>, vector<1x8x4xf32>
    %49 = vector.shape_cast %48 : vector<1x8x4xf32> to vector<8x4xf32>
    %cst_51 = arith.constant dense<0.000000e+00> : vector<8x64xf32>
    %50 = tpu.matmul %49, %47, %cst_51 {dimension_numbers = #tpu.dot_dimension_numbers<[1], [0], [0], [1], [0, 0, 1, 1], [], []>} : vector<8x4xf32>, vector<4x64xf32>, vector<8x64xf32> -> vector<8x64xf32>
    %51 = arith.addf %44, %50 : vector<8x64xf32>
    %c7 = arith.constant 7 : index
    %c0_52 = arith.constant 0 : index
    %c0_53 = arith.constant 0 : index
    %52 = vector.load %arg2[%c7, %c0_52, %c0_53] : memref<9x256x64xf32, #tpu.memory_space<vmem>>, vector<1x256x64xf32>
    %53 = vector.shape_cast %52 : vector<1x256x64xf32> to vector<256x64xf32>
    %cst_54 = arith.constant dense<0.000000e+00> : vector<4x64xf32>
    %54 = tpu.matmul %1, %53, %cst_54 {dimension_numbers = #tpu.dot_dimension_numbers<[1], [0], [0], [1], [0, 0, 1, 1], [], []>} : vector<4x256xf32>, vector<256x64xf32>, vector<4x64xf32> -> vector<4x64xf32>
    %c7_55 = arith.constant 7 : index
    %c0_56 = arith.constant 0 : index
    %c0_57 = arith.constant 0 : index
    %55 = vector.load %arg3[%c7_55, %c0_56, %c0_57] : memref<9x8x4xf32, #tpu.memory_space<vmem>>, vector<1x8x4xf32>
    %56 = vector.shape_cast %55 : vector<1x8x4xf32> to vector<8x4xf32>
    %cst_58 = arith.constant dense<0.000000e+00> : vector<8x64xf32>
    %57 = tpu.matmul %56, %54, %cst_58 {dimension_numbers = #tpu.dot_dimension_numbers<[1], [0], [0], [1], [0, 0, 1, 1], [], []>} : vector<8x4xf32>, vector<4x64xf32>, vector<8x64xf32> -> vector<8x64xf32>
    %58 = arith.addf %51, %57 : vector<8x64xf32>
    %c8 = arith.constant 8 : index
    %c0_59 = arith.constant 0 : index
    %c0_60 = arith.constant 0 : index
    %59 = vector.load %arg2[%c8, %c0_59, %c0_60] : memref<9x256x64xf32, #tpu.memory_space<vmem>>, vector<1x256x64xf32>
    %60 = vector.shape_cast %59 : vector<1x256x64xf32> to vector<256x64xf32>
    %cst_61 = arith.constant dense<0.000000e+00> : vector<4x64xf32>
    %61 = tpu.matmul %1, %60, %cst_61 {dimension_numbers = #tpu.dot_dimension_numbers<[1], [0], [0], [1], [0, 0, 1, 1], [], []>} : vector<4x256xf32>, vector<256x64xf32>, vector<4x64xf32> -> vector<4x64xf32>
    %c8_62 = arith.constant 8 : index
    %c0_63 = arith.constant 0 : index
    %c0_64 = arith.constant 0 : index
    %62 = vector.load %arg3[%c8_62, %c0_63, %c0_64] : memref<9x8x4xf32, #tpu.memory_space<vmem>>, vector<1x8x4xf32>
    %63 = vector.shape_cast %62 : vector<1x8x4xf32> to vector<8x4xf32>
    %cst_65 = arith.constant dense<0.000000e+00> : vector<8x64xf32>
    %64 = tpu.matmul %63, %61, %cst_65 {dimension_numbers = #tpu.dot_dimension_numbers<[1], [0], [0], [1], [0, 0, 1, 1], [], []>} : vector<8x4xf32>, vector<4x64xf32>, vector<8x64xf32> -> vector<8x64xf32>
    %65 = arith.addf %58, %64 : vector<8x64xf32>
    %c0_66 = arith.constant 0 : index
    %c0_67 = arith.constant 0 : index
    %66 = vector.load %arg4[%c0_66, %c0_67] : memref<8x64xf32, #tpu.memory_space<vmem>>, vector<8x64xf32>
    %67 = arith.addf %65, %66 : vector<8x64xf32>
    %cst_68 = arith.constant 0.000000e+00 : f32
    %68 = vector.broadcast %cst_68 : f32 to vector<8x64xf32>
    %69 = arith.maximumf %67, %68 : vector<8x64xf32>
    %cst_69 = arith.constant 0.000000e+00 : f32
    %70 = vector.broadcast %cst_69 : f32 to vector<16x16xf32>
    %c0_70 = arith.constant 0 : index
    %c0_71 = arith.constant 0 : index
    %c0_72 = arith.constant 0 : index
    %71 = vector.load %arg5[%c0_70, %c0_71, %c0_72] : memref<9x64x16xf32, #tpu.memory_space<vmem>>, vector<1x64x16xf32>
    %72 = vector.shape_cast %71 : vector<1x64x16xf32> to vector<64x16xf32>
    %cst_73 = arith.constant dense<0.000000e+00> : vector<8x16xf32>
    %73 = tpu.matmul %69, %72, %cst_73 {dimension_numbers = #tpu.dot_dimension_numbers<[1], [0], [0], [1], [0, 0, 1, 1], [], []>} : vector<8x64xf32>, vector<64x16xf32>, vector<8x16xf32> -> vector<8x16xf32>
    %c0_74 = arith.constant 0 : index
    %c0_75 = arith.constant 0 : index
    %c0_76 = arith.constant 0 : index
    %74 = vector.load %arg6[%c0_74, %c0_75, %c0_76] : memref<9x16x8xf32, #tpu.memory_space<vmem>>, vector<1x16x8xf32>
    %75 = vector.shape_cast %74 : vector<1x16x8xf32> to vector<16x8xf32>
    %cst_77 = arith.constant dense<0.000000e+00> : vector<16x16xf32>
    %76 = tpu.matmul %75, %73, %cst_77 {dimension_numbers = #tpu.dot_dimension_numbers<[1], [0], [0], [1], [0, 0, 1, 1], [], []>} : vector<16x8xf32>, vector<8x16xf32>, vector<16x16xf32> -> vector<16x16xf32>
    %77 = arith.addf %70, %76 : vector<16x16xf32>
    %c1_78 = arith.constant 1 : index
    %c0_79 = arith.constant 0 : index
    %c0_80 = arith.constant 0 : index
    %78 = vector.load %arg5[%c1_78, %c0_79, %c0_80] : memref<9x64x16xf32, #tpu.memory_space<vmem>>, vector<1x64x16xf32>
    %79 = vector.shape_cast %78 : vector<1x64x16xf32> to vector<64x16xf32>
    %cst_81 = arith.constant dense<0.000000e+00> : vector<8x16xf32>
    %80 = tpu.matmul %69, %79, %cst_81 {dimension_numbers = #tpu.dot_dimension_numbers<[1], [0], [0], [1], [0, 0, 1, 1], [], []>} : vector<8x64xf32>, vector<64x16xf32>, vector<8x16xf32> -> vector<8x16xf32>
    %c1_82 = arith.constant 1 : index
    %c0_83 = arith.constant 0 : index
    %c0_84 = arith.constant 0 : index
    %81 = vector.load %arg6[%c1_82, %c0_83, %c0_84] : memref<9x16x8xf32, #tpu.memory_space<vmem>>, vector<1x16x8xf32>
    %82 = vector.shape_cast %81 : vector<1x16x8xf32> to vector<16x8xf32>
    %cst_85 = arith.constant dense<0.000000e+00> : vector<16x16xf32>
    %83 = tpu.matmul %82, %80, %cst_85 {dimension_numbers = #tpu.dot_dimension_numbers<[1], [0], [0], [1], [0, 0, 1, 1], [], []>} : vector<16x8xf32>, vector<8x16xf32>, vector<16x16xf32> -> vector<16x16xf32>
    %84 = arith.addf %77, %83 : vector<16x16xf32>
    %c2_86 = arith.constant 2 : index
    %c0_87 = arith.constant 0 : index
    %c0_88 = arith.constant 0 : index
    %85 = vector.load %arg5[%c2_86, %c0_87, %c0_88] : memref<9x64x16xf32, #tpu.memory_space<vmem>>, vector<1x64x16xf32>
    %86 = vector.shape_cast %85 : vector<1x64x16xf32> to vector<64x16xf32>
    %cst_89 = arith.constant dense<0.000000e+00> : vector<8x16xf32>
    %87 = tpu.matmul %69, %86, %cst_89 {dimension_numbers = #tpu.dot_dimension_numbers<[1], [0], [0], [1], [0, 0, 1, 1], [], []>} : vector<8x64xf32>, vector<64x16xf32>, vector<8x16xf32> -> vector<8x16xf32>
    %c2_90 = arith.constant 2 : index
    %c0_91 = arith.constant 0 : index
    %c0_92 = arith.constant 0 : index
    %88 = vector.load %arg6[%c2_90, %c0_91, %c0_92] : memref<9x16x8xf32, #tpu.memory_space<vmem>>, vector<1x16x8xf32>
    %89 = vector.shape_cast %88 : vector<1x16x8xf32> to vector<16x8xf32>
    %cst_93 = arith.constant dense<0.000000e+00> : vector<16x16xf32>
    %90 = tpu.matmul %89, %87, %cst_93 {dimension_numbers = #tpu.dot_dimension_numbers<[1], [0], [0], [1], [0, 0, 1, 1], [], []>} : vector<16x8xf32>, vector<8x16xf32>, vector<16x16xf32> -> vector<16x16xf32>
    %91 = arith.addf %84, %90 : vector<16x16xf32>
    %c3_94 = arith.constant 3 : index
    %c0_95 = arith.constant 0 : index
    %c0_96 = arith.constant 0 : index
    %92 = vector.load %arg5[%c3_94, %c0_95, %c0_96] : memref<9x64x16xf32, #tpu.memory_space<vmem>>, vector<1x64x16xf32>
    %93 = vector.shape_cast %92 : vector<1x64x16xf32> to vector<64x16xf32>
    %cst_97 = arith.constant dense<0.000000e+00> : vector<8x16xf32>
    %94 = tpu.matmul %69, %93, %cst_97 {dimension_numbers = #tpu.dot_dimension_numbers<[1], [0], [0], [1], [0, 0, 1, 1], [], []>} : vector<8x64xf32>, vector<64x16xf32>, vector<8x16xf32> -> vector<8x16xf32>
    %c3_98 = arith.constant 3 : index
    %c0_99 = arith.constant 0 : index
    %c0_100 = arith.constant 0 : index
    %95 = vector.load %arg6[%c3_98, %c0_99, %c0_100] : memref<9x16x8xf32, #tpu.memory_space<vmem>>, vector<1x16x8xf32>
    %96 = vector.shape_cast %95 : vector<1x16x8xf32> to vector<16x8xf32>
    %cst_101 = arith.constant dense<0.000000e+00> : vector<16x16xf32>
    %97 = tpu.matmul %96, %94, %cst_101 {dimension_numbers = #tpu.dot_dimension_numbers<[1], [0], [0], [1], [0, 0, 1, 1], [], []>} : vector<16x8xf32>, vector<8x16xf32>, vector<16x16xf32> -> vector<16x16xf32>
    %98 = arith.addf %91, %97 : vector<16x16xf32>
    %c4_102 = arith.constant 4 : index
    %c0_103 = arith.constant 0 : index
    %c0_104 = arith.constant 0 : index
    %99 = vector.load %arg5[%c4_102, %c0_103, %c0_104] : memref<9x64x16xf32, #tpu.memory_space<vmem>>, vector<1x64x16xf32>
    %100 = vector.shape_cast %99 : vector<1x64x16xf32> to vector<64x16xf32>
    %cst_105 = arith.constant dense<0.000000e+00> : vector<8x16xf32>
    %101 = tpu.matmul %69, %100, %cst_105 {dimension_numbers = #tpu.dot_dimension_numbers<[1], [0], [0], [1], [0, 0, 1, 1], [], []>} : vector<8x64xf32>, vector<64x16xf32>, vector<8x16xf32> -> vector<8x16xf32>
    %c4_106 = arith.constant 4 : index
    %c0_107 = arith.constant 0 : index
    %c0_108 = arith.constant 0 : index
    %102 = vector.load %arg6[%c4_106, %c0_107, %c0_108] : memref<9x16x8xf32, #tpu.memory_space<vmem>>, vector<1x16x8xf32>
    %103 = vector.shape_cast %102 : vector<1x16x8xf32> to vector<16x8xf32>
    %cst_109 = arith.constant dense<0.000000e+00> : vector<16x16xf32>
    %104 = tpu.matmul %103, %101, %cst_109 {dimension_numbers = #tpu.dot_dimension_numbers<[1], [0], [0], [1], [0, 0, 1, 1], [], []>} : vector<16x8xf32>, vector<8x16xf32>, vector<16x16xf32> -> vector<16x16xf32>
    %105 = arith.addf %98, %104 : vector<16x16xf32>
    %c5_110 = arith.constant 5 : index
    %c0_111 = arith.constant 0 : index
    %c0_112 = arith.constant 0 : index
    %106 = vector.load %arg5[%c5_110, %c0_111, %c0_112] : memref<9x64x16xf32, #tpu.memory_space<vmem>>, vector<1x64x16xf32>
    %107 = vector.shape_cast %106 : vector<1x64x16xf32> to vector<64x16xf32>
    %cst_113 = arith.constant dense<0.000000e+00> : vector<8x16xf32>
    %108 = tpu.matmul %69, %107, %cst_113 {dimension_numbers = #tpu.dot_dimension_numbers<[1], [0], [0], [1], [0, 0, 1, 1], [], []>} : vector<8x64xf32>, vector<64x16xf32>, vector<8x16xf32> -> vector<8x16xf32>
    %c5_114 = arith.constant 5 : index
    %c0_115 = arith.constant 0 : index
    %c0_116 = arith.constant 0 : index
    %109 = vector.load %arg6[%c5_114, %c0_115, %c0_116] : memref<9x16x8xf32, #tpu.memory_space<vmem>>, vector<1x16x8xf32>
    %110 = vector.shape_cast %109 : vector<1x16x8xf32> to vector<16x8xf32>
    %cst_117 = arith.constant dense<0.000000e+00> : vector<16x16xf32>
    %111 = tpu.matmul %110, %108, %cst_117 {dimension_numbers = #tpu.dot_dimension_numbers<[1], [0], [0], [1], [0, 0, 1, 1], [], []>} : vector<16x8xf32>, vector<8x16xf32>, vector<16x16xf32> -> vector<16x16xf32>
    %112 = arith.addf %105, %111 : vector<16x16xf32>
    %c6_118 = arith.constant 6 : index
    %c0_119 = arith.constant 0 : index
    %c0_120 = arith.constant 0 : index
    %113 = vector.load %arg5[%c6_118, %c0_119, %c0_120] : memref<9x64x16xf32, #tpu.memory_space<vmem>>, vector<1x64x16xf32>
    %114 = vector.shape_cast %113 : vector<1x64x16xf32> to vector<64x16xf32>
    %cst_121 = arith.constant dense<0.000000e+00> : vector<8x16xf32>
    %115 = tpu.matmul %69, %114, %cst_121 {dimension_numbers = #tpu.dot_dimension_numbers<[1], [0], [0], [1], [0, 0, 1, 1], [], []>} : vector<8x64xf32>, vector<64x16xf32>, vector<8x16xf32> -> vector<8x16xf32>
    %c6_122 = arith.constant 6 : index
    %c0_123 = arith.constant 0 : index
    %c0_124 = arith.constant 0 : index
    %116 = vector.load %arg6[%c6_122, %c0_123, %c0_124] : memref<9x16x8xf32, #tpu.memory_space<vmem>>, vector<1x16x8xf32>
    %117 = vector.shape_cast %116 : vector<1x16x8xf32> to vector<16x8xf32>
    %cst_125 = arith.constant dense<0.000000e+00> : vector<16x16xf32>
    %118 = tpu.matmul %117, %115, %cst_125 {dimension_numbers = #tpu.dot_dimension_numbers<[1], [0], [0], [1], [0, 0, 1, 1], [], []>} : vector<16x8xf32>, vector<8x16xf32>, vector<16x16xf32> -> vector<16x16xf32>
    %119 = arith.addf %112, %118 : vector<16x16xf32>
    %c7_126 = arith.constant 7 : index
    %c0_127 = arith.constant 0 : index
    %c0_128 = arith.constant 0 : index
    %120 = vector.load %arg5[%c7_126, %c0_127, %c0_128] : memref<9x64x16xf32, #tpu.memory_space<vmem>>, vector<1x64x16xf32>
    %121 = vector.shape_cast %120 : vector<1x64x16xf32> to vector<64x16xf32>
    %cst_129 = arith.constant dense<0.000000e+00> : vector<8x16xf32>
    %122 = tpu.matmul %69, %121, %cst_129 {dimension_numbers = #tpu.dot_dimension_numbers<[1], [0], [0], [1], [0, 0, 1, 1], [], []>} : vector<8x64xf32>, vector<64x16xf32>, vector<8x16xf32> -> vector<8x16xf32>
    %c7_130 = arith.constant 7 : index
    %c0_131 = arith.constant 0 : index
    %c0_132 = arith.constant 0 : index
    %123 = vector.load %arg6[%c7_130, %c0_131, %c0_132] : memref<9x16x8xf32, #tpu.memory_space<vmem>>, vector<1x16x8xf32>
    %124 = vector.shape_cast %123 : vector<1x16x8xf32> to vector<16x8xf32>
    %cst_133 = arith.constant dense<0.000000e+00> : vector<16x16xf32>
    %125 = tpu.matmul %124, %122, %cst_133 {dimension_numbers = #tpu.dot_dimension_numbers<[1], [0], [0], [1], [0, 0, 1, 1], [], []>} : vector<16x8xf32>, vector<8x16xf32>, vector<16x16xf32> -> vector<16x16xf32>
    %126 = arith.addf %119, %125 : vector<16x16xf32>
    %c8_134 = arith.constant 8 : index
    %c0_135 = arith.constant 0 : index
    %c0_136 = arith.constant 0 : index
    %127 = vector.load %arg5[%c8_134, %c0_135, %c0_136] : memref<9x64x16xf32, #tpu.memory_space<vmem>>, vector<1x64x16xf32>
    %128 = vector.shape_cast %127 : vector<1x64x16xf32> to vector<64x16xf32>
    %cst_137 = arith.constant dense<0.000000e+00> : vector<8x16xf32>
    %129 = tpu.matmul %69, %128, %cst_137 {dimension_numbers = #tpu.dot_dimension_numbers<[1], [0], [0], [1], [0, 0, 1, 1], [], []>} : vector<8x64xf32>, vector<64x16xf32>, vector<8x16xf32> -> vector<8x16xf32>
    %c8_138 = arith.constant 8 : index
    %c0_139 = arith.constant 0 : index
    %c0_140 = arith.constant 0 : index
    %130 = vector.load %arg6[%c8_138, %c0_139, %c0_140] : memref<9x16x8xf32, #tpu.memory_space<vmem>>, vector<1x16x8xf32>
    %131 = vector.shape_cast %130 : vector<1x16x8xf32> to vector<16x8xf32>
    %cst_141 = arith.constant dense<0.000000e+00> : vector<16x16xf32>
    %132 = tpu.matmul %131, %129, %cst_141 {dimension_numbers = #tpu.dot_dimension_numbers<[1], [0], [0], [1], [0, 0, 1, 1], [], []>} : vector<16x8xf32>, vector<8x16xf32>, vector<16x16xf32> -> vector<16x16xf32>
    %133 = arith.addf %126, %132 : vector<16x16xf32>
    %c0_142 = arith.constant 0 : index
    %c0_143 = arith.constant 0 : index
    %134 = vector.load %arg7[%c0_142, %c0_143] : memref<16x16xf32, #tpu.memory_space<vmem>>, vector<16x16xf32>
    %135 = arith.addf %133, %134 : vector<16x16xf32>
    %cst_144 = arith.constant 0.000000e+00 : f32
    %136 = vector.broadcast %cst_144 : f32 to vector<16x16xf32>
    %137 = arith.maximumf %135, %136 : vector<16x16xf32>
    %c0_145 = arith.constant 0 : index
    %c0_146 = arith.constant 0 : index
    %c0_147 = arith.constant 0 : index
    %138 = vector.load %arg8[%c0_145, %c0_146, %c0_147] : memref<1x16x16xf32, #tpu.memory_space<vmem>>, vector<1x16x16xf32>
    %139 = vector.shape_cast %138 : vector<1x16x16xf32> to vector<16x16xf32>
    %140 = vector.shape_cast %137 : vector<16x16xf32> to vector<1x16x16xf32>
    tpu.vector_store %arg8[%c0_145, %c0_146, %c0_147], %140 {strides = array<i32>} : memref<1x16x16xf32, #tpu.memory_space<vmem>>, vector<1x16x16xf32>,
    return
  }
  func.func @transform_0(%arg0: i32) -> (i32, i32, i32) {
    %c0_i32 = arith.constant 0 : i32
    %c0_i32_0 = arith.constant 0 : i32
    %c0_i32_1 = arith.constant 0 : i32
    return %arg0, %c0_i32, %c0_i32_0 : i32, i32, i32
  }
  func.func @transform_1(%arg0: i32) -> (i32, i32, i32) {
    %c0_i32 = arith.constant 0 : i32
    %c0_i32_0 = arith.constant 0 : i32
    %c0_i32_1 = arith.constant 0 : i32
    %c0_i32_2 = arith.constant 0 : i32
    return %c0_i32, %c0_i32_0, %c0_i32_1 : i32, i32, i32
  }
  func.func @transform_2(%arg0: i32) -> (i32, i32, i32) {
    %c0_i32 = arith.constant 0 : i32
    %c0_i32_0 = arith.constant 0 : i32
    %c0_i32_1 = arith.constant 0 : i32
    %c0_i32_2 = arith.constant 0 : i32
    return %c0_i32, %c0_i32_0, %c0_i32_1 : i32, i32, i32
  }
  func.func @transform_3(%arg0: i32) -> (i32, i32) {
    %c0_i32 = arith.constant 0 : i32
    %c0_i32_0 = arith.constant 0 : i32
    %c0_i32_1 = arith.constant 0 : i32
    return %c0_i32, %c0_i32_0 : i32, i32
  }
  func.func @transform_4(%arg0: i32) -> (i32, i32, i32) {
    %c0_i32 = arith.constant 0 : i32
    %c0_i32_0 = arith.constant 0 : i32
    %c0_i32_1 = arith.constant 0 : i32
    %c0_i32_2 = arith.constant 0 : i32
    return %c0_i32, %c0_i32_0, %c0_i32_1 : i32, i32, i32
  }
  func.func @transform_5(%arg0: i32) -> (i32, i32, i32) {
    %c0_i32 = arith.constant 0 : i32
    %c0_i32_0 = arith.constant 0 : i32
    %c0_i32_1 = arith.constant 0 : i32
    %c0_i32_2 = arith.constant 0 : i32
    return %c0_i32, %c0_i32_0, %c0_i32_1 : i32, i32, i32
  }
  func.func @transform_6(%arg0: i32) -> (i32, i32) {
    %c0_i32 = arith.constant 0 : i32
    %c0_i32_0 = arith.constant 0 : i32
    %c0_i32_1 = arith.constant 0 : i32
    return %c0_i32, %c0_i32_0 : i32, i32
  }
  func.func @transform_7(%arg0: i32) -> (i32, i32, i32) {
    %c0_i32 = arith.constant 0 : i32
    %c0_i32_0 = arith.constant 0 : i32
    %c0_i32_1 = arith.constant 0 : i32
    return %arg0, %c0_i32, %c0_i32_0 : i32, i32, i32
  }
}

</mosaic_0001>

<llo_original>
// kernel: tpu_custom_call.1
$region0: #{tpu_custom_call.1}
  #allocation0 [shape = 'u32[]', space=smem, size = 0x4, offset = 0x4, fixed_abs, tag = 'smem constant byte address 0x4 - core index']
  #allocation1 [shape = 'u32[72,128]{1,0:T(1,128)}', space=vmem, size = 0x9000, scoped, tag = 'internal scratch']
  %s0 = inlined_call_operand.vmem [shape: f32[2,4,256], index: 0, kind: input, shape index: {}]
  %s1 = inlined_call_operand.vmem [shape: f32[9,256,64], index: 1, kind: input, shape index: {}]
  %s2 = inlined_call_operand.vmem [shape: f32[9,8,4], index: 2, kind: input, shape index: {}]
  %s3 = inlined_call_operand.vmem [shape: f32[8,64], index: 3, kind: input, shape index: {}]
  %s4 = inlined_call_operand.vmem [shape: f32[9,64,16], index: 4, kind: input, shape index: {}]
  %s5 = inlined_call_operand.vmem [shape: f32[9,16,8], index: 5, kind: input, shape index: {}]
  %s6 = inlined_call_operand.vmem [shape: f32[16,16], index: 6, kind: input, shape index: {}]
  %s7 = inlined_call_operand.hbm [shape: f32[2,16,16], index: 7, kind: output, shape index: {}]
  %s8 = sld [smem:[#allocation0]]
  $region61: #{tpu_custom_call.1} parent=0
    _
  %s10 = ssub.s32 1, %s8
  %s11 = scalar_select 0, %s10, %s8
  $region1: #{tpu_custom_call.1} parent=0
    #allocation2 [shape = 'u8[16384]{0}', space=vmem, size = 0x4000, scoped, tag = 'output window, operand 0']
    #allocation3 [shape = 's32[2]{0}', space=sflag, size = 0x8, scoped, tag = 'scoped memory for tpu_custom_call.1']
    %12 = vsyncpa [#allocation3], 0
    %s13 = scalar_lea.sflag [#allocation3], 1
    %14 = vsyncpa %s13, 0
    loop: start=0, step=1, limit=4
    $region2: #{tpu_custom_call.1} parent=1 // loop_pre_header
      _
    $region3: #{tpu_custom_call.1} parent=1 // loop_header
      %s16 = sphi 0, %s20
      %p17 = scmp.ge.s32.totalorder %s16, 4
      %s26 = sphi 0, %s28
      %s29 = sphi 0, %s26
      %s30 = sphi 0, %s29
      %s46 = sphi 0, %s30
      %s50 = sphi 0, %s50
      %s52 = sphi 0, %s50
      %s53 = sphi 0, %s52
      %s67 = sphi 0, %s53
      %s71 = sphi 0, %s71
      %s73 = sphi 0, %s71
      %s74 = sphi 0, %s73
      %s88 = sphi 0, %s74
      %s92 = sphi 0, %s92
      %s94 = sphi 0, %s92
      %s95 = sphi 0, %s94
      %s109 = sphi 0, %s95
      %s113 = sphi 0, %s113
      %s115 = sphi 0, %s113
      %s116 = sphi 0, %s115
      %s130 = sphi 0, %s116
      %s134 = sphi 0, %s134
      %s136 = sphi 0, %s134
      %s137 = sphi 0, %s136
      %s151 = sphi 0, %s137
      %s155 = sphi 0, %s155
      %s157 = sphi 0, %s155
      %s158 = sphi 0, %s157
      %s172 = sphi 0, %s158
      %s178 = sphi 0, %s180
      %s181 = sphi 0, %s178
      %s182 = sphi 0, %s181
      %s198 = sphi 0, %s182
    $region4: #{tpu_custom_call.1} parent=1 // loop_header_branch
      %19 = sbr.rel (%p17) target = $region8
    $region5: #{tpu_custom_call.1} parent=1 // loop_body
      %s21 = ssub.s32 %s16, 1
      %s22 = ssub.s32 %s16, 2
      %s23 = sadd.s32 %s16, 1
      %s24 = ssub.s32 %s16, %s23
      %p25 = scmp.eq.s32.totalorder %s24, 0
      %s27 = sadd.s32 %s26, 1
      %s28 = scalar_select %p25, %s26, %s27
      %p31 = pneg %p25
      %p32 = scmp.eq.s32.totalorder %s16, 1
      %p33 = por %p31, %p32
      %p34 = scmp.ne.s32.totalorder %s26, %s29
      %p35 = scmp.eq.s32.totalorder %s16, 0
      %p36 = por %p34, %p35
      %p37 = scmp.ne.s32.totalorder %s26, %s29
      %p38 = scmp.eq.s32.totalorder %s21, 1
      %p39 = por %p37, %p38
      %p40 = scmp.ne.s32.totalorder %s29, %s30
      %p41 = scmp.eq.s32.totalorder %s21, 0
      %p42 = por %p40, %p41
      %p43 = scmp.ne.s32.totalorder %s29, %s30
      %p44 = scmp.eq.s32.totalorder %s22, 1
      %p45 = por %p43, %p44
      %p47 = scmp.ne.s32.totalorder %s30, %s46
      %p48 = scmp.eq.s32.totalorder %s22, 0
      %p49 = por %p47, %p48
      %s51 = sadd.s32 %s50, 1
      %p54 = scmp.eq.s32.totalorder %s16, 1
      %p55 = scmp.ne.s32.totalorder %s50, %s52
      %p56 = scmp.eq.s32.totalorder %s16, 0
      %p57 = por %p55, %p56
      %p58 = scmp.ne.s32.totalorder %s50, %s52
      %p59 = scmp.eq.s32.totalorder %s21, 1
      %p60 = por %p58, %p59
      %p61 = scmp.ne.s32.totalorder %s52, %s53
      %p62 = scmp.eq.s32.totalorder %s21, 0
      %p63 = por %p61, %p62
      %p64 = scmp.ne.s32.totalorder %s52, %s53
      %p65 = scmp.eq.s32.totalorder %s22, 1
      %p66 = por %p64, %p65
      %p68 = scmp.ne.s32.totalorder %s53, %s67
      %p69 = scmp.eq.s32.totalorder %s22, 0
      %p70 = por %p68, %p69
      %s72 = sadd.s32 %s71, 1
      %p75 = scmp.eq.s32.totalorder %s16, 1
      %p76 = scmp.ne.s32.totalorder %s71, %s73
      %p77 = scmp.eq.s32.totalorder %s16, 0
      %p78 = por %p76, %p77
      %p79 = scmp.ne.s32.totalorder %s71, %s73
      %p80 = scmp.eq.s32.totalorder %s21, 1
      %p81 = por %p79, %p80
      %p82 = scmp.ne.s32.totalorder %s73, %s74
      %p83 = scmp.eq.s32.totalorder %s21, 0
      %p84 = por %p82, %p83
      %p85 = scmp.ne.s32.totalorder %s73, %s74
      %p86 = scmp.eq.s32.totalorder %s22, 1
      %p87 = por %p85, %p86
      %p89 = scmp.ne.s32.totalorder %s74, %s88
      %p90 = scmp.eq.s32.totalorder %s22, 0
      %p91 = por %p89, %p90
      %s93 = sadd.s32 %s92, 1
      %p96 = scmp.eq.s32.totalorder %s16, 1
      %p97 = scmp.ne.s32.totalorder %s92, %s94
      %p98 = scmp.eq.s32.totalorder %s16, 0
      %p99 = por %p97, %p98
      %p100 = scmp.ne.s32.totalorder %s92, %s94
      %p101 = scmp.eq.s32.totalorder %s21, 1
      %p102 = por %p100, %p101
      %p103 = scmp.ne.s32.totalorder %s94, %s95
      %p104 = scmp.eq.s32.totalorder %s21, 0
      %p105 = por %p103, %p104
      %p106 = scmp.ne.s32.totalorder %s94, %s95
      %p107 = scmp.eq.s32.totalorder %s22, 1
      %p108 = por %p106, %p107
      %p110 = scmp.ne.s32.totalorder %s95, %s109
      %p111 = scmp.eq.s32.totalorder %s22, 0
      %p112 = por %p110, %p111
      %s114 = sadd.s32 %s113, 1
      %p117 = scmp.eq.s32.totalorder %s16, 1
      %p118 = scmp.ne.s32.totalorder %s113, %s115
      %p119 = scmp.eq.s32.totalorder %s16, 0
      %p120 = por %p118, %p119
      %p121 = scmp.ne.s32.totalorder %s113, %s115
      %p122 = scmp.eq.s32.totalorder %s21, 1
      %p123 = por %p121, %p122
      %p124 = scmp.ne.s32.totalorder %s115, %s116
      %p125 = scmp.eq.s32.totalorder %s21, 0
      %p126 = por %p124, %p125
      %p127 = scmp.ne.s32.totalorder %s115, %s116
      %p128 = scmp.eq.s32.totalorder %s22, 1
      %p129 = por %p127, %p128
      %p131 = scmp.ne.s32.totalorder %s116, %s130
      %p132 = scmp.eq.s32.totalorder %s22, 0
      %p133 = por %p131, %p132
      %s135 = sadd.s32 %s134, 1
      %p138 = scmp.eq.s32.totalorder %s16, 1
      %p139 = scmp.ne.s32.totalorder %s134, %s136
      %p140 = scmp.eq.s32.totalorder %s16, 0
      %p141 = por %p139, %p140
      %p142 = scmp.ne.s32.totalorder %s134, %s136
      %p143 = scmp.eq.s32.totalorder %s21, 1
      %p144 = por %p142, %p143
      %p145 = scmp.ne.s32.totalorder %s136, %s137
      %p146 = scmp.eq.s32.totalorder %s21, 0
      %p147 = por %p145, %p146
      %p148 = scmp.ne.s32.totalorder %s136, %s137
      %p149 = scmp.eq.s32.totalorder %s22, 1
      %p150 = por %p148, %p149
      %p152 = scmp.ne.s32.totalorder %s137, %s151
      %p153 = scmp.eq.s32.totalorder %s22, 0
      %p154 = por %p152, %p153
      %s156 = sadd.s32 %s155, 1
      %p159 = scmp.eq.s32.totalorder %s16, 1
      %p160 = scmp.ne.s32.totalorder %s155, %s157
      %p161 = scmp.eq.s32.totalorder %s16, 0
      %p162 = por %p160, %p161
      %p163 = scmp.ne.s32.totalorder %s155, %s157
      %p164 = scmp.eq.s32.totalorder %s21, 1
      %p165 = por %p163, %p164
      %p166 = scmp.ne.s32.totalorder %s157, %s158
      %p167 = scmp.eq.s32.totalorder %s21, 0
      %p168 = por %p166, %p167
      %p169 = scmp.ne.s32.totalorder %s157, %s158
      %p170 = scmp.eq.s32.totalorder %s22, 1
      %p171 = por %p169, %p170
      %p173 = scmp.ne.s32.totalorder %s158, %s172
      %p174 = scmp.eq.s32.totalorder %s22, 0
      %p175 = por %p173, %p174
      %s176 = ssub.s32 %s16, %s23
      %p177 = scmp.eq.s32.totalorder %s176, 0
      %s179 = sadd.s32 %s178, 1
      %s180 = scalar_select %p177, %s178, %s179
      %p183 = pneg %p177
      %p184 = scmp.eq.s32.totalorder %s16, 1
      %p185 = por %p183, %p184
      %p186 = scmp.ne.s32.totalorder %s178, %s181
      %p187 = scmp.eq.s32.totalorder %s16, 0
      %p188 = por %p186, %p187
      %p189 = scmp.ne.s32.totalorder %s178, %s181
      %p190 = scmp.eq.s32.totalorder %s21, 1
      %p191 = por %p189, %p190
      %p192 = scmp.ne.s32.totalorder %s181, %s182
      %p193 = scmp.eq.s32.totalorder %s21, 0
      %p194 = por %p192, %p193
      %p195 = scmp.ne.s32.totalorder %s181, %s182
      %p196 = scmp.eq.s32.totalorder %s22, 1
      %p197 = por %p195, %p196
      %p199 = scmp.ne.s32.totalorder %s182, %s198
      %p200 = scmp.eq.s32.totalorder %s22, 0
      %p201 = por %p199, %p200
      %p202 = scmp.le.s32.totalorder 1, %s16
      %p203 = scmp.lt.s32.totalorder %s16, 3
      %p204 = pnand %p202, %p203
      %p205 = pneg %p204
      // Predicated region
      $region9: #{tpu_custom_call.1} parent=5 // pred_check
        _
      $region10: #{tpu_custom_call.1} parent=5 // pred_check_branch
        %207 = sbr.rel (%p204) target = $region12
      $region11: #{tpu_custom_call.1} parent=5 // pred_region
        %s208 = ssub.s32 %s16, 1
        // Predicated region
        $region13: #{tpu_custom_call.1} parent=11 // pred_check
          %p209 = pneg %p63
        $region14: #{tpu_custom_call.1} parent=11 // pred_check_branch
          %211 = sbr.rel (%p209) target = $region16
        $region15: #{tpu_custom_call.1} parent=11 // pred_region
          _
        $region16: #{tpu_custom_call.1} parent=11 // pred_fallthru
          _
        // Predicated region
        $region17: #{tpu_custom_call.1} parent=11 // pred_check
          %p212 = pneg %p84
        $region18: #{tpu_custom_call.1} parent=11 // pred_check_branch
          %214 = sbr.rel (%p212) target = $region20
        $region19: #{tpu_custom_call.1} parent=11 // pred_region
          _
        $region20: #{tpu_custom_call.1} parent=11 // pred_fallthru
          _
        // Predicated region
        $region21: #{tpu_custom_call.1} parent=11 // pred_check
          %p215 = pneg %p105
        $region22: #{tpu_custom_call.1} parent=11 // pred_check_branch
          %217 = sbr.rel (%p215) target = $region24
        $region23: #{tpu_custom_call.1} parent=11 // pred_region
          _
        $region24: #{tpu_custom_call.1} parent=11 // pred_fallthru
          _
        // Predicated region
        $region25: #{tpu_custom_call.1} parent=11 // pred_check
          %p218 = pneg %p126
        $region26: #{tpu_custom_call.1} parent=11 // pred_check_branch
          %220 = sbr.rel (%p218) target = $region28
        $region27: #{tpu_custom_call.1} parent=11 // pred_region
          _
        $region28: #{tpu_custom_call.1} parent=11 // pred_fallthru
          _
        // Predicated region
        $region29: #{tpu_custom_call.1} parent=11 // pred_check
          %p221 = pneg %p147
        $region30: #{tpu_custom_call.1} parent=11 // pred_check_branch
          %223 = sbr.rel (%p221) target = $region32
        $region31: #{tpu_custom_call.1} parent=11 // pred_region
          _
        $region32: #{tpu_custom_call.1} parent=11 // pred_fallthru
          _
        // Predicated region
        $region33: #{tpu_custom_call.1} parent=11 // pred_check
          %p224 = pneg %p168
        $region34: #{tpu_custom_call.1} parent=11 // pred_check_branch
          %226 = sbr.rel (%p224) target = $region36
        $region35: #{tpu_custom_call.1} parent=11 // pred_region
          _
        $region36: #{tpu_custom_call.1} parent=11 // pred_fallthru
          _
      $region12: #{tpu_custom_call.1} parent=5 // pred_fallthru
        _
      %p227 = scmp.lt.s32.totalorder %s16, 2
      // Predicated region
      $region37: #{tpu_custom_call.1} parent=5 // pred_check
        %p228 = pneg %p227
      $region38: #{tpu_custom_call.1} parent=5 // pred_check_branch
        %230 = sbr.rel (%p228) target = $region40
      $region39: #{tpu_custom_call.1} parent=5 // pred_region
        // Predicated region
        $region41: #{tpu_custom_call.1} parent=39 // pred_check
          %p231 = pneg %p36
        $region42: #{tpu_custom_call.1} parent=39 // pred_check_branch
          %233 = sbr.rel (%p231) target = $region44
        $region43: #{tpu_custom_call.1} parent=39 // pred_region
          %p234 = scmp.lt.s32.totalorder %s16, 1
          %s235 = scalar_select %p234, %s16, 1
          %s236 = smul.addr %s235, 2
          %s237 = smul.addr %s236, 4
          %s238 = scalar_lea.vmem %s0, %s237
        $region44: #{tpu_custom_call.1} parent=39 // pred_fallthru
          _
      $region40: #{tpu_custom_call.1} parent=5 // pred_fallthru
        _
      %p239 = scmp.le.s32.totalorder 1, %s16
      %p240 = scmp.lt.s32.totalorder %s16, 3
      %p241 = pnand %p239, %p240
      %p242 = pneg %p241
      // Predicated region
      $region45: #{tpu_custom_call.1} parent=5 // pred_check
        _
      $region46: #{tpu_custom_call.1} parent=5 // pred_check_branch
        %244 = sbr.rel (%p241) target = $region48
      $region47: #{tpu_custom_call.1} parent=5 // pred_region
        %s245 = ssub.s32 %s16, 1
        %p246 = scmp.lt.s32.totalorder %s21, 1
        %s247 = scalar_select %p246, %s21, 1
        %s248 = smul.addr %s247, 2
        %s249 = smul.addr %s248, 4
        %s250 = scalar_lea.vmem %s0, %s249
        %p251 = pneg %p42
        %p252 = pneg %p39
        %p253 = pneg %p63
        %p254 = pneg %p60
        %p255 = pneg %p84
        %p256 = pneg %p81
        %p257 = pneg %p105
        %p258 = pneg %p102
        %p259 = pneg %p126
        %p260 = pneg %p123
        %p261 = pneg %p147
        %p262 = pneg %p144
        %p263 = pneg %p168
        %p264 = pneg %p165
        %p265 = pneg %p194
        %p266 = pneg %p191
        %s267 = sand.u32 %s181, 1
        %s268 = scalar_lea.sflag [#allocation3], %s267
        %s269 = sand.u32 %s181, 1
        %s270 = smul.addr %s269, 16
        %s271 = scalar_lea.vmem [#allocation2], %s270
        %p272 = scmp.lt.s32.totalorder %s21, 1
        %s273 = scalar_select %p272, %s21, 1
        %s274 = smul.addr %s273, 2
        %s275 = smul.addr %s274, 4
        %s276 = scalar_lea.vmem %s0, %s275
        %v277 = vld [vmem:[%s276] sm:$0xff]
        %v278 = vld [vmem:[%s1] sm:$0xff]
        %v279 = vld [vmem:[%s1 + $0x8] sm:$0xff]
        %v280 = vld [vmem:[%s1 + $0x10] sm:$0xff]
        %v281 = vld [vmem:[%s1 + $0x18] sm:$0xff]
        %v282 = vld [vmem:[%s1 + $0x20] sm:$0xff]
        %v283 = vld [vmem:[%s1 + $0x28] sm:$0xff]
        %v284 = vld [vmem:[%s1 + $0x30] sm:$0xff]
        %v285 = vld [vmem:[%s1 + $0x38] sm:$0xff]
        %v286 = vld [vmem:[%s1 + $0x40] sm:$0xff]
        %v287 = vld [vmem:[%s1 + $0x48] sm:$0xff]
        %v288 = vld [vmem:[%s1 + $0x50] sm:$0xff]
        %v289 = vld [vmem:[%s1 + $0x58] sm:$0xff]
        %v290 = vld [vmem:[%s1 + $0x60] sm:$0xff]
        %v291 = vld [vmem:[%s1 + $0x68] sm:$0xff]
        %v292 = vld [vmem:[%s1 + $0x70] sm:$0xff]
        %v293 = vld [vmem:[%s1 + $0x78] sm:$0xff]
        %v294 = vld [vmem:[%s1 + $0x80] sm:$0xff]
        %v295 = vld [vmem:[%s1 + $0x88] sm:$0xff]
        %v296 = vld [vmem:[%s1 + $0x90] sm:$0xff]
        %v297 = vld [vmem:[%s1 + $0x98] sm:$0xff]
        %v298 = vld [vmem:[%s1 + $0xa0] sm:$0xff]
        %v299 = vld [vmem:[%s1 + $0xa8] sm:$0xff]
        %v300 = vld [vmem:[%s1 + $0xb0] sm:$0xff]
        %v301 = vld [vmem:[%s1 + $0xb8] sm:$0xff]
        %v302 = vld [vmem:[%s1 + $0xc0] sm:$0xff]
        %v303 = vld [vmem:[%s1 + $0xc8] sm:$0xff]
        %v304 = vld [vmem:[%s1 + $0xd0] sm:$0xff]
        %v305 = vld [vmem:[%s1 + $0xd8] sm:$0xff]
        %v306 = vld [vmem:[%s1 + $0xe0] sm:$0xff]
        %v307 = vld [vmem:[%s1 + $0xe8] sm:$0xff]
        %v308 = vld [vmem:[%s1 + $0xf0] sm:$0xff]
        %v309 = vld [vmem:[%s1 + $0xf8] sm:$0xff]
        %311 = vst [vmem:[#allocation1] ss:$2 sm:$0xff] %v277
        %v312 = vld.sshfl [vmem:[#allocation1] sm:$0xff pattern:$0x75316420]
        %v313 = vld.sshfl [vmem:[#allocation1 + $0x8] sm:$0xff pattern:$0x75316420]
        %316 = vmatpush.msra.mxu0 %v293
        %317 = vmatpush.msra.mxu0 %v292
        %318 = vmatpush.msra.mxu0 %v291
        %319 = vmatpush.msra.mxu0 %v290
        %320 = vmatpush.msra.mxu0 %v289
        %321 = vmatpush.msra.mxu0 %v288
        %322 = vmatpush.msra.mxu0 %v287
        %323 = vmatpush.msra.mxu0 %v286
        %324 = vmatpush.msra.mxu0 %v285
        %325 = vmatpush.msra.mxu0 %v284
        %326 = vmatpush.msra.mxu0 %v283
        %327 = vmatpush.msra.mxu0 %v282
        %328 = vmatpush.msra.mxu0 %v281
        %329 = vmatpush.msra.mxu0 %v280
        %330 = vmatpush.msra.mxu0 %v279
        %331 = vmatpush.msra.mxu0 %v278
        %332 = vmatmul.f32.gmra.mxu0 %v312
        %v333 = vpop.f32.mrf.mxu0
        %v334 = vadd.f32 0.0, %v333
        %335 = vdwg.mxu0
        %336 = vmatpush.msra.mxu0 %v309
        %337 = vmatpush.msra.mxu0 %v308
        %338 = vmatpush.msra.mxu0 %v307
        %339 = vmatpush.msra.mxu0 %v306
        %340 = vmatpush.msra.mxu0 %v305
        %341 = vmatpush.msra.mxu0 %v304
        %342 = vmatpush.msra.mxu0 %v303
        %343 = vmatpush.msra.mxu0 %v302
        %344 = vmatpush.msra.mxu0 %v301
        %345 = vmatpush.msra.mxu0 %v300
        %346 = vmatpush.msra.mxu0 %v299
        %347 = vmatpush.msra.mxu0 %v298
        %348 = vmatpush.msra.mxu0 %v297
        %349 = vmatpush.msra.mxu0 %v296
        %350 = vmatpush.msra.mxu0 %v295
        %351 = vmatpush.msra.mxu0 %v294
        %352 = vmatmul.f32.gmra.mxu0 %v313
        %v353 = vpop.f32.mrf.mxu0
        %v354 = vadd.f32 %v334, %v353
        %355 = vdwg.mxu0
        %v356 = vld [vmem:[%s2] sm:$0xff]
        %s357 = scalar_lea.vmem %s1, 256
        %v358 = vld [vmem:[%s357] sm:$0xff]
        %v359 = vld [vmem:[%s357 + $0x8] sm:$0xff]
        %v360 = vld [vmem:[%s357 + $0x10] sm:$0xff]
        %v361 = vld [vmem:[%s357 + $0x18] sm:$0xff]
        %v362 = vld [vmem:[%s357 + $0x20] sm:$0xff]
        %v363 = vld [vmem:[%s357 + $0x28] sm:$0xff]
        %v364 = vld [vmem:[%s357 + $0x30] sm:$0xff]
        %v365 = vld [vmem:[%s357 + $0x38] sm:$0xff]
        %v366 = vld [vmem:[%s357 + $0x40] sm:$0xff]
        %v367 = vld [vmem:[%s357 + $0x48] sm:$0xff]
        %v368 = vld [vmem:[%s357 + $0x50] sm:$0xff]
        %v369 = vld [vmem:[%s357 + $0x58] sm:$0xff]
        %v370 = vld [vmem:[%s357 + $0x60] sm:$0xff]
        %v371 = vld [vmem:[%s357 + $0x68] sm:$0xff]
        %v372 = vld [vmem:[%s357 + $0x70] sm:$0xff]
        %v373 = vld [vmem:[%s357 + $0x78] sm:$0xff]
        %v374 = vld [vmem:[%s357 + $0x80] sm:$0xff]
        %v375 = vld [vmem:[%s357 + $0x88] sm:$0xff]
        %v376 = vld [vmem:[%s357 + $0x90] sm:$0xff]
        %v377 = vld [vmem:[%s357 + $0x98] sm:$0xff]
        %v378 = vld [vmem:[%s357 + $0xa0] sm:$0xff]
        %v379 = vld [vmem:[%s357 + $0xa8] sm:$0xff]
        %v380 = vld [vmem:[%s357 + $0xb0] sm:$0xff]
        %v381 = vld [vmem:[%s357 + $0xb8] sm:$0xff]
        %v382 = vld [vmem:[%s357 + $0xc0] sm:$0xff]
        %v383 = vld [vmem:[%s357 + $0xc8] sm:$0xff]
        %v384 = vld [vmem:[%s357 + $0xd0] sm:$0xff]
        %v385 = vld [vmem:[%s357 + $0xd8] sm:$0xff]
        %v386 = vld [vmem:[%s357 + $0xe0] sm:$0xff]
        %v387 = vld [vmem:[%s357 + $0xe8] sm:$0xff]
        %v388 = vld [vmem:[%s357 + $0xf0] sm:$0xff]
        %v389 = vld [vmem:[%s357 + $0xf8] sm:$0xff]
        %390 = vst [vmem:[#allocation1] ss:$2 sm:$0xff] %v277
        %v391 = vld.sshfl [vmem:[#allocation1] sm:$0xff pattern:$0x75316420]
        %v392 = vld.sshfl [vmem:[#allocation1 + $0x8] sm:$0xff pattern:$0x75316420]
        %395 = vmatpush.msra.mxu0 %v373
        %396 = vmatpush.msra.mxu0 %v372
        %397 = vmatpush.msra.mxu0 %v371
        %398 = vmatpush.msra.mxu0 %v370
        %399 = vmatpush.msra.mxu0 %v369
        %400 = vmatpush.msra.mxu0 %v368
        %401 = vmatpush.msra.mxu0 %v367
        %402 = vmatpush.msra.mxu0 %v366
        %403 = vmatpush.msra.mxu0 %v365
        %404 = vmatpush.msra.mxu0 %v364
        %405 = vmatpush.msra.mxu0 %v363
        %406 = vmatpush.msra.mxu0 %v362
        %407 = vmatpush.msra.mxu0 %v361
        %408 = vmatpush.msra.mxu0 %v360
        %409 = vmatpush.msra.mxu0 %v359
        %410 = vmatpush.msra.mxu0 %v358
        %411 = vmatmul.f32.gmra.mxu0 %v391
        %v412 = vpop.f32.mrf.mxu0
        %v413 = vadd.f32 0.0, %v412
        %414 = vdwg.mxu0
        %415 = vmatpush.msra.mxu0 %v389
        %416 = vmatpush.msra.mxu0 %v388
        %417 = vmatpush.msra.mxu0 %v387
        %418 = vmatpush.msra.mxu0 %v386
        %419 = vmatpush.msra.mxu0 %v385
        %420 = vmatpush.msra.mxu0 %v384
        %421 = vmatpush.msra.mxu0 %v383
        %422 = vmatpush.msra.mxu0 %v382
        %423 = vmatpush.msra.mxu0 %v381
        %424 = vmatpush.msra.mxu0 %v380
        %425 = vmatpush.msra.mxu0 %v379
        %426 = vmatpush.msra.mxu0 %v378
        %427 = vmatpush.msra.mxu0 %v377
        %428 = vmatpush.msra.mxu0 %v376
        %429 = vmatpush.msra.mxu0 %v375
        %430 = vmatpush.msra.mxu0 %v374
        %431 = vmatmul.f32.gmra.mxu0 %v392
        %v432 = vpop.f32.mrf.mxu0
        %v433 = vadd.f32 %v413, %v432
        %434 = vdwg.mxu0
        %s435 = scalar_lea.vmem %s2, 8
        %v436 = vld [vmem:[%s435] sm:$0xff]
        %vm437 = vcmask 31744
        %v439 = vsel %vm437, %v436, 0
        %vm441 = vcmask 1043456
        %v443 = vsel %vm441, %v433, 0
        %445 = vmatpush.msra.mxu0 0.0
        %446 = vmatpush.msra.mxu0 0.0
        %447 = vmatpush.msra.mxu0 0.0
        %448 = vmatpush.msra.mxu0 0.0
        %449 = vmatpush.msra.mxu0 0.0
        %450 = vmatpush.msra.mxu0 0.0
        %451 = vmatpush.msra.mxu0 0.0
        %452 = vmatpush.msra.mxu0 0.0
        %453 = vmatpush.msra.mxu0 0.0
        %454 = vmatpush.msra.mxu0 0.0
        %455 = vmatpush.msra.mxu0 0.0
        %456 = vmatpush.msra.mxu0 0.0
        %457 = vmatpush.msra.mxu0 0.0
        %458 = vmatpush.msra.mxu0 0.0
        %459 = vmatpush.msra.mxu0 0.0
        %460 = vmatpush.msra.mxu0 %v443
        %461 = vmatmul.f32.gmra.mxu0 %v439
        %v462 = vpop.f32.mrf.mxu0
        %v463 = vadd.f32 0.0, %v462
        %464 = vdwg.mxu0
        %v466 = vsel %vm437, %v356, 0
        %v469 = vsel %vm441, %v354, 0
        %471 = vmatpush.msra.mxu0 0.0
        %472 = vmatpush.msra.mxu0 0.0
        %473 = vmatpush.msra.mxu0 0.0
        %474 = vmatpush.msra.mxu0 0.0
        %475 = vmatpush.msra.mxu0 0.0
        %476 = vmatpush.msra.mxu0 0.0
        %477 = vmatpush.msra.mxu0 0.0
        %478 = vmatpush.msra.mxu0 0.0
        %479 = vmatpush.msra.mxu0 0.0
        %480 = vmatpush.msra.mxu0 0.0
        %481 = vmatpush.msra.mxu0 0.0
        %482 = vmatpush.msra.mxu0 0.0
        %483 = vmatpush.msra.mxu0 0.0
        %484 = vmatpush.msra.mxu0 0.0
        %485 = vmatpush.msra.mxu0 0.0
        %486 = vmatpush.msra.mxu0 %v469
        %487 = vmatmul.f32.gmra.mxu0 %v466
        %v488 = vpop.f32.mrf.mxu0
        %v489 = vadd.f32 %v463, %v488
        %490 = vdwg.mxu0
        %s491 = scalar_lea.vmem %s1, 512
        %v492 = vld [vmem:[%s491] sm:$0xff]
        %v493 = vld [vmem:[%s491 + $0x8] sm:$0xff]
        %v494 = vld [vmem:[%s491 + $0x10] sm:$0xff]
        %v495 = vld [vmem:[%s491 + $0x18] sm:$0xff]
        %v496 = vld [vmem:[%s491 + $0x20] sm:$0xff]
        %v497 = vld [vmem:[%s491 + $0x28] sm:$0xff]
        %v498 = vld [vmem:[%s491 + $0x30] sm:$0xff]
        %v499 = vld [vmem:[%s491 + $0x38] sm:$0xff]
        %v500 = vld [vmem:[%s491 + $0x40] sm:$0xff]
        %v501 = vld [vmem:[%s491 + $0x48] sm:$0xff]
        %v502 = vld [vmem:[%s491 + $0x50] sm:$0xff]
        %v503 = vld [vmem:[%s491 + $0x58] sm:$0xff]
        %v504 = vld [vmem:[%s491 + $0x60] sm:$0xff]
        %v505 = vld [vmem:[%s491 + $0x68] sm:$0xff]
        %v506 = vld [vmem:[%s491 + $0x70] sm:$0xff]
        %v507 = vld [vmem:[%s491 + $0x78] sm:$0xff]
        %v508 = vld [vmem:[%s491 + $0x80] sm:$0xff]
        %v509 = vld [vmem:[%s491 + $0x88] sm:$0xff]
        %v510 = vld [vmem:[%s491 + $0x90] sm:$0xff]
        %v511 = vld [vmem:[%s491 + $0x98] sm:$0xff]
        %v512 = vld [vmem:[%s491 + $0xa0] sm:$0xff]
        %v513 = vld [vmem:[%s491 + $0xa8] sm:$0xff]
        %v514 = vld [vmem:[%s491 + $0xb0] sm:$0xff]
        %v515 = vld [vmem:[%s491 + $0xb8] sm:$0xff]
        %v516 = vld [vmem:[%s491 + $0xc0] sm:$0xff]
        %v517 = vld [vmem:[%s491 + $0xc8] sm:$0xff]
        %v518 = vld [vmem:[%s491 + $0xd0] sm:$0xff]
        %v519 = vld [vmem:[%s491 + $0xd8] sm:$0xff]
        %v520 = vld [vmem:[%s491 + $0xe0] sm:$0xff]
        %v521 = vld [vmem:[%s491 + $0xe8] sm:$0xff]
        %v522 = vld [vmem:[%s491 + $0xf0] sm:$0xff]
        %v523 = vld [vmem:[%s491 + $0xf8] sm:$0xff]
        %524 = vst [vmem:[#allocation1] ss:$2 sm:$0xff] %v277
        %v525 = vld.sshfl [vmem:[#allocation1] sm:$0xff pattern:$0x75316420]
        %v526 = vld.sshfl [vmem:[#allocation1 + $0x8] sm:$0xff pattern:$0x75316420]
        %529 = vmatpush.msra.mxu0 %v507
        %530 = vmatpush.msra.mxu0 %v506
        %531 = vmatpush.msra.mxu0 %v505
        %532 = vmatpush.msra.mxu0 %v504
        %533 = vmatpush.msra.mxu0 %v503
        %534 = vmatpush.msra.mxu0 %v502
        %535 = vmatpush.msra.mxu0 %v501
        %536 = vmatpush.msra.mxu0 %v500
        %537 = vmatpush.msra.mxu0 %v499
        %538 = vmatpush.msra.mxu0 %v498
        %539 = vmatpush.msra.mxu0 %v497
        %540 = vmatpush.msra.mxu0 %v496
        %541 = vmatpush.msra.mxu0 %v495
        %542 = vmatpush.msra.mxu0 %v494
        %543 = vmatpush.msra.mxu0 %v493
        %544 = vmatpush.msra.mxu0 %v492
        %545 = vmatmul.f32.gmra.mxu0 %v525
        %v546 = vpop.f32.mrf.mxu0
        %v547 = vadd.f32 0.0, %v546
        %548 = vdwg.mxu0
        %549 = vmatpush.msra.mxu0 %v523
        %550 = vmatpush.msra.mxu0 %v522
        %551 = vmatpush.msra.mxu0 %v521
        %552 = vmatpush.msra.mxu0 %v520
        %553 = vmatpush.msra.mxu0 %v519
        %554 = vmatpush.msra.mxu0 %v518
        %555 = vmatpush.msra.mxu0 %v517
        %556 = vmatpush.msra.mxu0 %v516
        %557 = vmatpush.msra.mxu0 %v515
        %558 = vmatpush.msra.mxu0 %v514
        %559 = vmatpush.msra.mxu0 %v513
        %560 = vmatpush.msra.mxu0 %v512
        %561 = vmatpush.msra.mxu0 %v511
        %562 = vmatpush.msra.mxu0 %v510
        %563 = vmatpush.msra.mxu0 %v509
        %564 = vmatpush.msra.mxu0 %v508
        %565 = vmatmul.f32.gmra.mxu0 %v526
        %v566 = vpop.f32.mrf.mxu0
        %v567 = vadd.f32 %v547, %v566
        %568 = vdwg.mxu0
        %s569 = scalar_lea.vmem %s2, 16
        %v570 = vld [vmem:[%s569] sm:$0xff]
        %v572 = vsel %vm437, %v570, 0
        %v575 = vsel %vm441, %v567, 0
        %577 = vmatpush.msra.mxu0 0.0
        %578 = vmatpush.msra.mxu0 0.0
        %579 = vmatpush.msra.mxu0 0.0
        %580 = vmatpush.msra.mxu0 0.0
        %581 = vmatpush.msra.mxu0 0.0
        %582 = vmatpush.msra.mxu0 0.0
        %583 = vmatpush.msra.mxu0 0.0
        %584 = vmatpush.msra.mxu0 0.0
        %585 = vmatpush.msra.mxu0 0.0
        %586 = vmatpush.msra.mxu0 0.0
        %587 = vmatpush.msra.mxu0 0.0
        %588 = vmatpush.msra.mxu0 0.0
        %589 = vmatpush.msra.mxu0 0.0
        %590 = vmatpush.msra.mxu0 0.0
        %591 = vmatpush.msra.mxu0 0.0
        %592 = vmatpush.msra.mxu0 %v575
        %593 = vmatmul.f32.gmra.mxu0 %v572
        %v594 = vpop.f32.mrf.mxu0
        %v595 = vadd.f32 0.0, %v594
        %596 = vdwg.mxu0
        %v597 = vadd.f32 %v489, %v595
        %s598 = scalar_lea.vmem %s1, 768
        %v599 = vld [vmem:[%s598] sm:$0xff]
        %v600 = vld [vmem:[%s598 + $0x8] sm:$0xff]
        %v601 = vld [vmem:[%s598 + $0x10] sm:$0xff]
        %v602 = vld [vmem:[%s598 + $0x18] sm:$0xff]
        %v603 = vld [vmem:[%s598 + $0x20] sm:$0xff]
        %v604 = vld [vmem:[%s598 + $0x28] sm:$0xff]
        %v605 = vld [vmem:[%s598 + $0x30] sm:$0xff]
        %v606 = vld [vmem:[%s598 + $0x38] sm:$0xff]
        %v607 = vld [vmem:[%s598 + $0x40] sm:$0xff]
        %v608 = vld [vmem:[%s598 + $0x48] sm:$0xff]
        %v609 = vld [vmem:[%s598 + $0x50] sm:$0xff]
        %v610 = vld [vmem:[%s598 + $0x58] sm:$0xff]
        %v611 = vld [vmem:[%s598 + $0x60] sm:$0xff]
        %v612 = vld [vmem:[%s598 + $0x68] sm:$0xff]
        %v613 = vld [vmem:[%s598 + $0x70] sm:$0xff]
        %v614 = vld [vmem:[%s598 + $0x78] sm:$0xff]
        %v615 = vld [vmem:[%s598 + $0x80] sm:$0xff]
        %v616 = vld [vmem:[%s598 + $0x88] sm:$0xff]
        %v617 = vld [vmem:[%s598 + $0x90] sm:$0xff]
        %v618 = vld [vmem:[%s598 + $0x98] sm:$0xff]
        %v619 = vld [vmem:[%s598 + $0xa0] sm:$0xff]
        %v620 = vld [vmem:[%s598 + $0xa8] sm:$0xff]
        %v621 = vld [vmem:[%s598 + $0xb0] sm:$0xff]
        %v622 = vld [vmem:[%s598 + $0xb8] sm:$0xff]
        %v623 = vld [vmem:[%s598 + $0xc0] sm:$0xff]
        %v624 = vld [vmem:[%s598 + $0xc8] sm:$0xff]
        %v625 = vld [vmem:[%s598 + $0xd0] sm:$0xff]
        %v626 = vld [vmem:[%s598 + $0xd8] sm:$0xff]
        %v627 = vld [vmem:[%s598 + $0xe0] sm:$0xff]
        %v628 = vld [vmem:[%s598 + $0xe8] sm:$0xff]
        %v629 = vld [vmem:[%s598 + $0xf0] sm:$0xff]
        %v630 = vld [vmem:[%s598 + $0xf8] sm:$0xff]
        %631 = vst [vmem:[#allocation1] ss:$2 sm:$0xff] %v277
        %v632 = vld.sshfl [vmem:[#allocation1] sm:$0xff pattern:$0x75316420]
        %v633 = vld.sshfl [vmem:[#allocation1 + $0x8] sm:$0xff pattern:$0x75316420]
        %636 = vmatpush.msra.mxu0 %v614
        %637 = vmatpush.msra.mxu0 %v613
        %638 = vmatpush.msra.mxu0 %v612
        %639 = vmatpush.msra.mxu0 %v611
        %640 = vmatpush.msra.mxu0 %v610
        %641 = vmatpush.msra.mxu0 %v609
        %642 = vmatpush.msra.mxu0 %v608
        %643 = vmatpush.msra.mxu0 %v607
        %644 = vmatpush.msra.mxu0 %v606
        %645 = vmatpush.msra.mxu0 %v605
        %646 = vmatpush.msra.mxu0 %v604
        %647 = vmatpush.msra.mxu0 %v603
        %648 = vmatpush.msra.mxu0 %v602
        %649 = vmatpush.msra.mxu0 %v601
        %650 = vmatpush.msra.mxu0 %v600
        %651 = vmatpush.msra.mxu0 %v599
        %652 = vmatmul.f32.gmra.mxu0 %v632
        %v653 = vpop.f32.mrf.mxu0
        %v654 = vadd.f32 0.0, %v653
        %655 = vdwg.mxu0
        %656 = vmatpush.msra.mxu0 %v630
        %657 = vmatpush.msra.mxu0 %v629
        %658 = vmatpush.msra.mxu0 %v628
        %659 = vmatpush.msra.mxu0 %v627
        %660 = vmatpush.msra.mxu0 %v626
        %661 = vmatpush.msra.mxu0 %v625
        %662 = vmatpush.msra.mxu0 %v624
        %663 = vmatpush.msra.mxu0 %v623
        %664 = vmatpush.msra.mxu0 %v622
        %665 = vmatpush.msra.mxu0 %v621
        %666 = vmatpush.msra.mxu0 %v620
        %667 = vmatpush.msra.mxu0 %v619
        %668 = vmatpush.msra.mxu0 %v618
        %669 = vmatpush.msra.mxu0 %v617
        %670 = vmatpush.msra.mxu0 %v616
        %671 = vmatpush.msra.mxu0 %v615
        %672 = vmatmul.f32.gmra.mxu0 %v633
        %v673 = vpop.f32.mrf.mxu0
        %v674 = vadd.f32 %v654, %v673
        %675 = vdwg.mxu0
        %s676 = scalar_lea.vmem %s2, 24
        %v677 = vld [vmem:[%s676] sm:$0xff]
        %v679 = vsel %vm437, %v677, 0
        %v682 = vsel %vm441, %v674, 0
        %684 = vmatpush.msra.mxu0 0.0
        %685 = vmatpush.msra.mxu0 0.0
        %686 = vmatpush.msra.mxu0 0.0
        %687 = vmatpush.msra.mxu0 0.0
        %688 = vmatpush.msra.mxu0 0.0
        %689 = vmatpush.msra.mxu0 0.0
        %690 = vmatpush.msra.mxu0 0.0
        %691 = vmatpush.msra.mxu0 0.0
        %692 = vmatpush.msra.mxu0 0.0
        %693 = vmatpush.msra.mxu0 0.0
        %694 = vmatpush.msra.mxu0 0.0
        %695 = vmatpush.msra.mxu0 0.0
        %696 = vmatpush.msra.mxu0 0.0
        %697 = vmatpush.msra.mxu0 0.0
        %698 = vmatpush.msra.mxu0 0.0
        %699 = vmatpush.msra.mxu0 %v682
        %700 = vmatmul.f32.gmra.mxu0 %v679
        %v701 = vpop.f32.mrf.mxu0
        %v702 = vadd.f32 0.0, %v701
        %703 = vdwg.mxu0
        %v704 = vadd.f32 %v597, %v702
        %s705 = scalar_lea.vmem %s1, 1024
        %v706 = vld [vmem:[%s705] sm:$0xff]
        %v707 = vld [vmem:[%s705 + $0x8] sm:$0xff]
        %v708 = vld [vmem:[%s705 + $0x10] sm:$0xff]
        %v709 = vld [vmem:[%s705 + $0x18] sm:$0xff]
        %v710 = vld [vmem:[%s705 + $0x20] sm:$0xff]
        %v711 = vld [vmem:[%s705 + $0x28] sm:$0xff]
        %v712 = vld [vmem:[%s705 + $0x30] sm:$0xff]
        %v713 = vld [vmem:[%s705 + $0x38] sm:$0xff]
        %v714 = vld [vmem:[%s705 + $0x40] sm:$0xff]
        %v715 = vld [vmem:[%s705 + $0x48] sm:$0xff]
        %v716 = vld [vmem:[%s705 + $0x50] sm:$0xff]
        %v717 = vld [vmem:[%s705 + $0x58] sm:$0xff]
        %v718 = vld [vmem:[%s705 + $0x60] sm:$0xff]
        %v719 = vld [vmem:[%s705 + $0x68] sm:$0xff]
        %v720 = vld [vmem:[%s705 + $0x70] sm:$0xff]
        %v721 = vld [vmem:[%s705 + $0x78] sm:$0xff]
        %v722 = vld [vmem:[%s705 + $0x80] sm:$0xff]
        %v723 = vld [vmem:[%s705 + $0x88] sm:$0xff]
        %v724 = vld [vmem:[%s705 + $0x90] sm:$0xff]
        %v725 = vld [vmem:[%s705 + $0x98] sm:$0xff]
        %v726 = vld [vmem:[%s705 + $0xa0] sm:$0xff]
        %v727 = vld [vmem:[%s705 + $0xa8] sm:$0xff]
        %v728 = vld [vmem:[%s705 + $0xb0] sm:$0xff]
        %v729 = vld [vmem:[%s705 + $0xb8] sm:$0xff]
        %v730 = vld [vmem:[%s705 + $0xc0] sm:$0xff]
        %v731 = vld [vmem:[%s705 + $0xc8] sm:$0xff]
        %v732 = vld [vmem:[%s705 + $0xd0] sm:$0xff]
        %v733 = vld [vmem:[%s705 + $0xd8] sm:$0xff]
        %v734 = vld [vmem:[%s705 + $0xe0] sm:$0xff]
        %v735 = vld [vmem:[%s705 + $0xe8] sm:$0xff]
        %v736 = vld [vmem:[%s705 + $0xf0] sm:$0xff]
        %v737 = vld [vmem:[%s705 + $0xf8] sm:$0xff]
        %738 = vst [vmem:[#allocation1] ss:$2 sm:$0xff] %v277
        %v739 = vld.sshfl [vmem:[#allocation1] sm:$0xff pattern:$0x75316420]
        %v740 = vld.sshfl [vmem:[#allocation1 + $0x8] sm:$0xff pattern:$0x75316420]
        %743 = vmatpush.msra.mxu0 %v721
        %744 = vmatpush.msra.mxu0 %v720
        %745 = vmatpush.msra.mxu0 %v719
        %746 = vmatpush.msra.mxu0 %v718
        %747 = vmatpush.msra.mxu0 %v717
        %748 = vmatpush.msra.mxu0 %v716
        %749 = vmatpush.msra.mxu0 %v715
        %750 = vmatpush.msra.mxu0 %v714
        %751 = vmatpush.msra.mxu0 %v713
        %752 = vmatpush.msra.mxu0 %v712
        %753 = vmatpush.msra.mxu0 %v711
        %754 = vmatpush.msra.mxu0 %v710
        %755 = vmatpush.msra.mxu0 %v709
        %756 = vmatpush.msra.mxu0 %v708
        %757 = vmatpush.msra.mxu0 %v707
        %758 = vmatpush.msra.mxu0 %v706
        %759 = vmatmul.f32.gmra.mxu0 %v739
        %v760 = vpop.f32.mrf.mxu0
        %v761 = vadd.f32 0.0, %v760
        %762 = vdwg.mxu0
        %763 = vmatpush.msra.mxu0 %v737
        %764 = vmatpush.msra.mxu0 %v736
        %765 = vmatpush.msra.mxu0 %v735
        %766 = vmatpush.msra.mxu0 %v734
        %767 = vmatpush.msra.mxu0 %v733
        %768 = vmatpush.msra.mxu0 %v732
        %769 = vmatpush.msra.mxu0 %v731
        %770 = vmatpush.msra.mxu0 %v730
        %771 = vmatpush.msra.mxu0 %v729
        %772 = vmatpush.msra.mxu0 %v728
        %773 = vmatpush.msra.mxu0 %v727
        %774 = vmatpush.msra.mxu0 %v726
        %775 = vmatpush.msra.mxu0 %v725
        %776 = vmatpush.msra.mxu0 %v724
        %777 = vmatpush.msra.mxu0 %v723
        %778 = vmatpush.msra.mxu0 %v722
        %779 = vmatmul.f32.gmra.mxu0 %v740
        %v780 = vpop.f32.mrf.mxu0
        %v781 = vadd.f32 %v761, %v780
        %782 = vdwg.mxu0
        %s783 = scalar_lea.vmem %s2, 32
        %v784 = vld [vmem:[%s783] sm:$0xff]
        %v786 = vsel %vm437, %v784, 0
        %v789 = vsel %vm441, %v781, 0
        %791 = vmatpush.msra.mxu0 0.0
        %792 = vmatpush.msra.mxu0 0.0
        %793 = vmatpush.msra.mxu0 0.0
        %794 = vmatpush.msra.mxu0 0.0
        %795 = vmatpush.msra.mxu0 0.0
        %796 = vmatpush.msra.mxu0 0.0
        %797 = vmatpush.msra.mxu0 0.0
        %798 = vmatpush.msra.mxu0 0.0
        %799 = vmatpush.msra.mxu0 0.0
        %800 = vmatpush.msra.mxu0 0.0
        %801 = vmatpush.msra.mxu0 0.0
        %802 = vmatpush.msra.mxu0 0.0
        %803 = vmatpush.msra.mxu0 0.0
        %804 = vmatpush.msra.mxu0 0.0
        %805 = vmatpush.msra.mxu0 0.0
        %806 = vmatpush.msra.mxu0 %v789
        %807 = vmatmul.f32.gmra.mxu0 %v786
        %v808 = vpop.f32.mrf.mxu0
        %v809 = vadd.f32 0.0, %v808
        %810 = vdwg.mxu0
        %v811 = vadd.f32 %v704, %v809
        %s812 = scalar_lea.vmem %s1, 1280
        %v813 = vld [vmem:[%s812] sm:$0xff]
        %v814 = vld [vmem:[%s812 + $0x8] sm:$0xff]
        %v815 = vld [vmem:[%s812 + $0x10] sm:$0xff]
        %v816 = vld [vmem:[%s812 + $0x18] sm:$0xff]
        %v817 = vld [vmem:[%s812 + $0x20] sm:$0xff]
        %v818 = vld [vmem:[%s812 + $0x28] sm:$0xff]
        %v819 = vld [vmem:[%s812 + $0x30] sm:$0xff]
        %v820 = vld [vmem:[%s812 + $0x38] sm:$0xff]
        %v821 = vld [vmem:[%s812 + $0x40] sm:$0xff]
        %v822 = vld [vmem:[%s812 + $0x48] sm:$0xff]
        %v823 = vld [vmem:[%s812 + $0x50] sm:$0xff]
        %v824 = vld [vmem:[%s812 + $0x58] sm:$0xff]
        %v825 = vld [vmem:[%s812 + $0x60] sm:$0xff]
        %v826 = vld [vmem:[%s812 + $0x68] sm:$0xff]
        %v827 = vld [vmem:[%s812 + $0x70] sm:$0xff]
        %v828 = vld [vmem:[%s812 + $0x78] sm:$0xff]
        %v829 = vld [vmem:[%s812 + $0x80] sm:$0xff]
        %v830 = vld [vmem:[%s812 + $0x88] sm:$0xff]
        %v831 = vld [vmem:[%s812 + $0x90] sm:$0xff]
        %v832 = vld [vmem:[%s812 + $0x98] sm:$0xff]
        %v833 = vld [vmem:[%s812 + $0xa0] sm:$0xff]
        %v834 = vld [vmem:[%s812 + $0xa8] sm:$0xff]
        %v835 = vld [vmem:[%s812 + $0xb0] sm:$0xff]
        %v836 = vld [vmem:[%s812 + $0xb8] sm:$0xff]
        %v837 = vld [vmem:[%s812 + $0xc0] sm:$0xff]
        %v838 = vld [vmem:[%s812 + $0xc8] sm:$0xff]
        %v839 = vld [vmem:[%s812 + $0xd0] sm:$0xff]
        %v840 = vld [vmem:[%s812 + $0xd8] sm:$0xff]
        %v841 = vld [vmem:[%s812 + $0xe0] sm:$0xff]
        %v842 = vld [vmem:[%s812 + $0xe8] sm:$0xff]
        %v843 = vld [vmem:[%s812 + $0xf0] sm:$0xff]
        %v844 = vld [vmem:[%s812 + $0xf8] sm:$0xff]
        %845 = vst [vmem:[#allocation1] ss:$2 sm:$0xff] %v277
        %v846 = vld.sshfl [vmem:[#allocation1] sm:$0xff pattern:$0x75316420]
        %v847 = vld.sshfl [vmem:[#allocation1 + $0x8] sm:$0xff pattern:$0x75316420]
        %850 = vmatpush.msra.mxu0 %v828
        %851 = vmatpush.msra.mxu0 %v827
        %852 = vmatpush.msra.mxu0 %v826
        %853 = vmatpush.msra.mxu0 %v825
        %854 = vmatpush.msra.mxu0 %v824
        %855 = vmatpush.msra.mxu0 %v823
        %856 = vmatpush.msra.mxu0 %v822
        %857 = vmatpush.msra.mxu0 %v821
        %858 = vmatpush.msra.mxu0 %v820
        %859 = vmatpush.msra.mxu0 %v819
        %860 = vmatpush.msra.mxu0 %v818
        %861 = vmatpush.msra.mxu0 %v817
        %862 = vmatpush.msra.mxu0 %v816
        %863 = vmatpush.msra.mxu0 %v815
        %864 = vmatpush.msra.mxu0 %v814
        %865 = vmatpush.msra.mxu0 %v813
        %866 = vmatmul.f32.gmra.mxu0 %v846
        %v867 = vpop.f32.mrf.mxu0
        %v868 = vadd.f32 0.0, %v867
        %869 = vdwg.mxu0
        %870 = vmatpush.msra.mxu0 %v844
        %871 = vmatpush.msra.mxu0 %v843
        %872 = vmatpush.msra.mxu0 %v842
        %873 = vmatpush.msra.mxu0 %v841
        %874 = vmatpush.msra.mxu0 %v840
        %875 = vmatpush.msra.mxu0 %v839
        %876 = vmatpush.msra.mxu0 %v838
        %877 = vmatpush.msra.mxu0 %v837
        %878 = vmatpush.msra.mxu0 %v836
        %879 = vmatpush.msra.mxu0 %v835
        %880 = vmatpush.msra.mxu0 %v834
        %881 = vmatpush.msra.mxu0 %v833
        %882 = vmatpush.msra.mxu0 %v832
        %883 = vmatpush.msra.mxu0 %v831
        %884 = vmatpush.msra.mxu0 %v830
        %885 = vmatpush.msra.mxu0 %v829
        %886 = vmatmul.f32.gmra.mxu0 %v847
        %v887 = vpop.f32.mrf.mxu0
        %v888 = vadd.f32 %v868, %v887
        %889 = vdwg.mxu0
        %s890 = scalar_lea.vmem %s2, 40
        %v891 = vld [vmem:[%s890] sm:$0xff]
        %v893 = vsel %vm437, %v891, 0
        %v896 = vsel %vm441, %v888, 0
        %898 = vmatpush.msra.mxu0 0.0
        %899 = vmatpush.msra.mxu0 0.0
        %900 = vmatpush.msra.mxu0 0.0
        %901 = vmatpush.msra.mxu0 0.0
        %902 = vmatpush.msra.mxu0 0.0
        %903 = vmatpush.msra.mxu0 0.0
        %904 = vmatpush.msra.mxu0 0.0
        %905 = vmatpush.msra.mxu0 0.0
        %906 = vmatpush.msra.mxu0 0.0
        %907 = vmatpush.msra.mxu0 0.0
        %908 = vmatpush.msra.mxu0 0.0
        %909 = vmatpush.msra.mxu0 0.0
        %910 = vmatpush.msra.mxu0 0.0
        %911 = vmatpush.msra.mxu0 0.0
        %912 = vmatpush.msra.mxu0 0.0
        %913 = vmatpush.msra.mxu0 %v896
        %914 = vmatmul.f32.gmra.mxu0 %v893
        %v915 = vpop.f32.mrf.mxu0
        %v916 = vadd.f32 0.0, %v915
        %917 = vdwg.mxu0
        %v918 = vadd.f32 %v811, %v916
        %s919 = scalar_lea.vmem %s1, 1536
        %v920 = vld [vmem:[%s919] sm:$0xff]
        %v921 = vld [vmem:[%s919 + $0x8] sm:$0xff]
        %v922 = vld [vmem:[%s919 + $0x10] sm:$0xff]
        %v923 = vld [vmem:[%s919 + $0x18] sm:$0xff]
        %v924 = vld [vmem:[%s919 + $0x20] sm:$0xff]
        %v925 = vld [vmem:[%s919 + $0x28] sm:$0xff]
        %v926 = vld [vmem:[%s919 + $0x30] sm:$0xff]
        %v927 = vld [vmem:[%s919 + $0x38] sm:$0xff]
        %v928 = vld [vmem:[%s919 + $0x40] sm:$0xff]
        %v929 = vld [vmem:[%s919 + $0x48] sm:$0xff]
        %v930 = vld [vmem:[%s919 + $0x50] sm:$0xff]
        %v931 = vld [vmem:[%s919 + $0x58] sm:$0xff]
        %v932 = vld [vmem:[%s919 + $0x60] sm:$0xff]
        %v933 = vld [vmem:[%s919 + $0x68] sm:$0xff]
        %v934 = vld [vmem:[%s919 + $0x70] sm:$0xff]
        %v935 = vld [vmem:[%s919 + $0x78] sm:$0xff]
        %v936 = vld [vmem:[%s919 + $0x80] sm:$0xff]
        %v937 = vld [vmem:[%s919 + $0x88] sm:$0xff]
        %v938 = vld [vmem:[%s919 + $0x90] sm:$0xff]
        %v939 = vld [vmem:[%s919 + $0x98] sm:$0xff]
        %v940 = vld [vmem:[%s919 + $0xa0] sm:$0xff]
        %v941 = vld [vmem:[%s919 + $0xa8] sm:$0xff]
        %v942 = vld [vmem:[%s919 + $0xb0] sm:$0xff]
        %v943 = vld [vmem:[%s919 + $0xb8] sm:$0xff]
        %v944 = vld [vmem:[%s919 + $0xc0] sm:$0xff]
        %v945 = vld [vmem:[%s919 + $0xc8] sm:$0xff]
        %v946 = vld [vmem:[%s919 + $0xd0] sm:$0xff]
        %v947 = vld [vmem:[%s919 + $0xd8] sm:$0xff]
        %v948 = vld [vmem:[%s919 + $0xe0] sm:$0xff]
        %v949 = vld [vmem:[%s919 + $0xe8] sm:$0xff]
        %v950 = vld [vmem:[%s919 + $0xf0] sm:$0xff]
        %v951 = vld [vmem:[%s919 + $0xf8] sm:$0xff]
        %952 = vst [vmem:[#allocation1] ss:$2 sm:$0xff] %v277
        %v953 = vld.sshfl [vmem:[#allocation1] sm:$0xff pattern:$0x75316420]
        %v954 = vld.sshfl [vmem:[#allocation1 + $0x8] sm:$0xff pattern:$0x75316420]
        %957 = vmatpush.msra.mxu0 %v935
        %958 = vmatpush.msra.mxu0 %v934
        %959 = vmatpush.msra.mxu0 %v933
        %960 = vmatpush.msra.mxu0 %v932
        %961 = vmatpush.msra.mxu0 %v931
        %962 = vmatpush.msra.mxu0 %v930
        %963 = vmatpush.msra.mxu0 %v929
        %964 = vmatpush.msra.mxu0 %v928
        %965 = vmatpush.msra.mxu0 %v927
        %966 = vmatpush.msra.mxu0 %v926
        %967 = vmatpush.msra.mxu0 %v925
        %968 = vmatpush.msra.mxu0 %v924
        %969 = vmatpush.msra.mxu0 %v923
        %970 = vmatpush.msra.mxu0 %v922
        %971 = vmatpush.msra.mxu0 %v921
        %972 = vmatpush.msra.mxu0 %v920
        %973 = vmatmul.f32.gmra.mxu0 %v953
        %v974 = vpop.f32.mrf.mxu0
        %v975 = vadd.f32 0.0, %v974
        %976 = vdwg.mxu0
        %977 = vmatpush.msra.mxu0 %v951
        %978 = vmatpush.msra.mxu0 %v950
        %979 = vmatpush.msra.mxu0 %v949
        %980 = vmatpush.msra.mxu0 %v948
        %981 = vmatpush.msra.mxu0 %v947
        %982 = vmatpush.msra.mxu0 %v946
        %983 = vmatpush.msra.mxu0 %v945
        %984 = vmatpush.msra.mxu0 %v944
        %985 = vmatpush.msra.mxu0 %v943
        %986 = vmatpush.msra.mxu0 %v942
        %987 = vmatpush.msra.mxu0 %v941
        %988 = vmatpush.msra.mxu0 %v940
        %989 = vmatpush.msra.mxu0 %v939
        %990 = vmatpush.msra.mxu0 %v938
        %991 = vmatpush.msra.mxu0 %v937
        %992 = vmatpush.msra.mxu0 %v936
        %993 = vmatmul.f32.gmra.mxu0 %v954
        %v994 = vpop.f32.mrf.mxu0
        %v995 = vadd.f32 %v975, %v994
        %996 = vdwg.mxu0
        %s997 = scalar_lea.vmem %s2, 48
        %v998 = vld [vmem:[%s997] sm:$0xff]
        %v1000 = vsel %vm437, %v998, 0
        %v1003 = vsel %vm441, %v995, 0
        %1005 = vmatpush.msra.mxu0 0.0
        %1006 = vmatpush.msra.mxu0 0.0
        %1007 = vmatpush.msra.mxu0 0.0
        %1008 = vmatpush.msra.mxu0 0.0
        %1009 = vmatpush.msra.mxu0 0.0
        %1010 = vmatpush.msra.mxu0 0.0
        %1011 = vmatpush.msra.mxu0 0.0
        %1012 = vmatpush.msra.mxu0 0.0
        %1013 = vmatpush.msra.mxu0 0.0
        %1014 = vmatpush.msra.mxu0 0.0
        %1015 = vmatpush.msra.mxu0 0.0
        %1016 = vmatpush.msra.mxu0 0.0
        %1017 = vmatpush.msra.mxu0 0.0
        %1018 = vmatpush.msra.mxu0 0.0
        %1019 = vmatpush.msra.mxu0 0.0
        %1020 = vmatpush.msra.mxu0 %v1003
        %1021 = vmatmul.f32.gmra.mxu0 %v1000
        %v1022 = vpop.f32.mrf.mxu0
        %v1023 = vadd.f32 0.0, %v1022
        %1024 = vdwg.mxu0
        %v1025 = vadd.f32 %v918, %v1023
        %s1026 = scalar_lea.vmem %s1, 1792
        %v1027 = vld [vmem:[%s1026] sm:$0xff]
        %v1028 = vld [vmem:[%s1026 + $0x8] sm:$0xff]
        %v1029 = vld [vmem:[%s1026 + $0x10] sm:$0xff]
        %v1030 = vld [vmem:[%s1026 + $0x18] sm:$0xff]
        %v1031 = vld [vmem:[%s1026 + $0x20] sm:$0xff]
        %v1032 = vld [vmem:[%s1026 + $0x28] sm:$0xff]
        %v1033 = vld [vmem:[%s1026 + $0x30] sm:$0xff]
        %v1034 = vld [vmem:[%s1026 + $0x38] sm:$0xff]
        %v1035 = vld [vmem:[%s1026 + $0x40] sm:$0xff]
        %v1036 = vld [vmem:[%s1026 + $0x48] sm:$0xff]
        %v1037 = vld [vmem:[%s1026 + $0x50] sm:$0xff]
        %v1038 = vld [vmem:[%s1026 + $0x58] sm:$0xff]
        %v1039 = vld [vmem:[%s1026 + $0x60] sm:$0xff]
        %v1040 = vld [vmem:[%s1026 + $0x68] sm:$0xff]
        %v1041 = vld [vmem:[%s1026 + $0x70] sm:$0xff]
        %v1042 = vld [vmem:[%s1026 + $0x78] sm:$0xff]
        %v1043 = vld [vmem:[%s1026 + $0x80] sm:$0xff]
        %v1044 = vld [vmem:[%s1026 + $0x88] sm:$0xff]
        %v1045 = vld [vmem:[%s1026 + $0x90] sm:$0xff]
        %v1046 = vld [vmem:[%s1026 + $0x98] sm:$0xff]
        %v1047 = vld [vmem:[%s1026 + $0xa0] sm:$0xff]
        %v1048 = vld [vmem:[%s1026 + $0xa8] sm:$0xff]
        %v1049 = vld [vmem:[%s1026 + $0xb0] sm:$0xff]
        %v1050 = vld [vmem:[%s1026 + $0xb8] sm:$0xff]
        %v1051 = vld [vmem:[%s1026 + $0xc0] sm:$0xff]
        %v1052 = vld [vmem:[%s1026 + $0xc8] sm:$0xff]
        %v1053 = vld [vmem:[%s1026 + $0xd0] sm:$0xff]
        %v1054 = vld [vmem:[%s1026 + $0xd8] sm:$0xff]
        %v1055 = vld [vmem:[%s1026 + $0xe0] sm:$0xff]
        %v1056 = vld [vmem:[%s1026 + $0xe8] sm:$0xff]
        %v1057 = vld [vmem:[%s1026 + $0xf0] sm:$0xff]
        %v1058 = vld [vmem:[%s1026 + $0xf8] sm:$0xff]
        %1059 = vst [vmem:[#allocation1] ss:$2 sm:$0xff] %v277
        %v1060 = vld.sshfl [vmem:[#allocation1] sm:$0xff pattern:$0x75316420]
        %v1061 = vld.sshfl [vmem:[#allocation1 + $0x8] sm:$0xff pattern:$0x75316420]
        %1064 = vmatpush.msra.mxu0 %v1042
        %1065 = vmatpush.msra.mxu0 %v1041
        %1066 = vmatpush.msra.mxu0 %v1040
        %1067 = vmatpush.msra.mxu0 %v1039
        %1068 = vmatpush.msra.mxu0 %v1038
        %1069 = vmatpush.msra.mxu0 %v1037
        %1070 = vmatpush.msra.mxu0 %v1036
        %1071 = vmatpush.msra.mxu0 %v1035
        %1072 = vmatpush.msra.mxu0 %v1034
        %1073 = vmatpush.msra.mxu0 %v1033
        %1074 = vmatpush.msra.mxu0 %v1032
        %1075 = vmatpush.msra.mxu0 %v1031
        %1076 = vmatpush.msra.mxu0 %v1030
        %1077 = vmatpush.msra.mxu0 %v1029
        %1078 = vmatpush.msra.mxu0 %v1028
        %1079 = vmatpush.msra.mxu0 %v1027
        %1080 = vmatmul.f32.gmra.mxu0 %v1060
        %v1081 = vpop.f32.mrf.mxu0
        %v1082 = vadd.f32 0.0, %v1081
        %1083 = vdwg.mxu0
        %1084 = vmatpush.msra.mxu0 %v1058
        %1085 = vmatpush.msra.mxu0 %v1057
        %1086 = vmatpush.msra.mxu0 %v1056
        %1087 = vmatpush.msra.mxu0 %v1055
        %1088 = vmatpush.msra.mxu0 %v1054
        %1089 = vmatpush.msra.mxu0 %v1053
        %1090 = vmatpush.msra.mxu0 %v1052
        %1091 = vmatpush.msra.mxu0 %v1051
        %1092 = vmatpush.msra.mxu0 %v1050
        %1093 = vmatpush.msra.mxu0 %v1049
        %1094 = vmatpush.msra.mxu0 %v1048
        %1095 = vmatpush.msra.mxu0 %v1047
        %1096 = vmatpush.msra.mxu0 %v1046
        %1097 = vmatpush.msra.mxu0 %v1045
        %1098 = vmatpush.msra.mxu0 %v1044
        %1099 = vmatpush.msra.mxu0 %v1043
        %1100 = vmatmul.f32.gmra.mxu0 %v1061
        %v1101 = vpop.f32.mrf.mxu0
        %v1102 = vadd.f32 %v1082, %v1101
        %1103 = vdwg.mxu0
        %s1104 = scalar_lea.vmem %s2, 56
        %v1105 = vld [vmem:[%s1104] sm:$0xff]
        %v1107 = vsel %vm437, %v1105, 0
        %v1110 = vsel %vm441, %v1102, 0
        %1112 = vmatpush.msra.mxu0 0.0
        %1113 = vmatpush.msra.mxu0 0.0
        %1114 = vmatpush.msra.mxu0 0.0
        %1115 = vmatpush.msra.mxu0 0.0
        %1116 = vmatpush.msra.mxu0 0.0
        %1117 = vmatpush.msra.mxu0 0.0
        %1118 = vmatpush.msra.mxu0 0.0
        %1119 = vmatpush.msra.mxu0 0.0
        %1120 = vmatpush.msra.mxu0 0.0
        %1121 = vmatpush.msra.mxu0 0.0
        %1122 = vmatpush.msra.mxu0 0.0
        %1123 = vmatpush.msra.mxu0 0.0
        %1124 = vmatpush.msra.mxu0 0.0
        %1125 = vmatpush.msra.mxu0 0.0
        %1126 = vmatpush.msra.mxu0 0.0
        %1127 = vmatpush.msra.mxu0 %v1110
        %1128 = vmatmul.f32.gmra.mxu0 %v1107
        %v1129 = vpop.f32.mrf.mxu0
        %v1130 = vadd.f32 0.0, %v1129
        %1131 = vdwg.mxu0
        %v1132 = vadd.f32 %v1025, %v1130
        %s1133 = scalar_lea.vmem %s1, 2048
        %v1134 = vld [vmem:[%s1133] sm:$0xff]
        %v1135 = vld [vmem:[%s1133 + $0x8] sm:$0xff]
        %v1136 = vld [vmem:[%s1133 + $0x10] sm:$0xff]
        %v1137 = vld [vmem:[%s1133 + $0x18] sm:$0xff]
        %v1138 = vld [vmem:[%s1133 + $0x20] sm:$0xff]
        %v1139 = vld [vmem:[%s1133 + $0x28] sm:$0xff]
        %v1140 = vld [vmem:[%s1133 + $0x30] sm:$0xff]
        %v1141 = vld [vmem:[%s1133 + $0x38] sm:$0xff]
        %v1142 = vld [vmem:[%s1133 + $0x40] sm:$0xff]
        %v1143 = vld [vmem:[%s1133 + $0x48] sm:$0xff]
        %v1144 = vld [vmem:[%s1133 + $0x50] sm:$0xff]
        %v1145 = vld [vmem:[%s1133 + $0x58] sm:$0xff]
        %v1146 = vld [vmem:[%s1133 + $0x60] sm:$0xff]
        %v1147 = vld [vmem:[%s1133 + $0x68] sm:$0xff]
        %v1148 = vld [vmem:[%s1133 + $0x70] sm:$0xff]
        %v1149 = vld [vmem:[%s1133 + $0x78] sm:$0xff]
        %v1150 = vld [vmem:[%s1133 + $0x80] sm:$0xff]
        %v1151 = vld [vmem:[%s1133 + $0x88] sm:$0xff]
        %v1152 = vld [vmem:[%s1133 + $0x90] sm:$0xff]
        %v1153 = vld [vmem:[%s1133 + $0x98] sm:$0xff]
        %v1154 = vld [vmem:[%s1133 + $0xa0] sm:$0xff]
        %v1155 = vld [vmem:[%s1133 + $0xa8] sm:$0xff]
        %v1156 = vld [vmem:[%s1133 + $0xb0] sm:$0xff]
        %v1157 = vld [vmem:[%s1133 + $0xb8] sm:$0xff]
        %v1158 = vld [vmem:[%s1133 + $0xc0] sm:$0xff]
        %v1159 = vld [vmem:[%s1133 + $0xc8] sm:$0xff]
        %v1160 = vld [vmem:[%s1133 + $0xd0] sm:$0xff]
        %v1161 = vld [vmem:[%s1133 + $0xd8] sm:$0xff]
        %v1162 = vld [vmem:[%s1133 + $0xe0] sm:$0xff]
        %v1163 = vld [vmem:[%s1133 + $0xe8] sm:$0xff]
        %v1164 = vld [vmem:[%s1133 + $0xf0] sm:$0xff]
        %v1165 = vld [vmem:[%s1133 + $0xf8] sm:$0xff]
        %1166 = vst [vmem:[#allocation1] ss:$2 sm:$0xff] %v277
        %v1167 = vld.sshfl [vmem:[#allocation1] sm:$0xff pattern:$0x75316420]
        %v1168 = vld.sshfl [vmem:[#allocation1 + $0x8] sm:$0xff pattern:$0x75316420]
        %1171 = vmatpush.msra.mxu0 %v1149
        %1172 = vmatpush.msra.mxu0 %v1148
        %1173 = vmatpush.msra.mxu0 %v1147
        %1174 = vmatpush.msra.mxu0 %v1146
        %1175 = vmatpush.msra.mxu0 %v1145
        %1176 = vmatpush.msra.mxu0 %v1144
        %1177 = vmatpush.msra.mxu0 %v1143
        %1178 = vmatpush.msra.mxu0 %v1142
        %1179 = vmatpush.msra.mxu0 %v1141
        %1180 = vmatpush.msra.mxu0 %v1140
        %1181 = vmatpush.msra.mxu0 %v1139
        %1182 = vmatpush.msra.mxu0 %v1138
        %1183 = vmatpush.msra.mxu0 %v1137
        %1184 = vmatpush.msra.mxu0 %v1136
        %1185 = vmatpush.msra.mxu0 %v1135
        %1186 = vmatpush.msra.mxu0 %v1134
        %1187 = vmatmul.f32.gmra.mxu0 %v1167
        %v1188 = vpop.f32.mrf.mxu0
        %v1189 = vadd.f32 0.0, %v1188
        %1190 = vdwg.mxu0
        %1191 = vmatpush.msra.mxu0 %v1165
        %1192 = vmatpush.msra.mxu0 %v1164
        %1193 = vmatpush.msra.mxu0 %v1163
        %1194 = vmatpush.msra.mxu0 %v1162
        %1195 = vmatpush.msra.mxu0 %v1161
        %1196 = vmatpush.msra.mxu0 %v1160
        %1197 = vmatpush.msra.mxu0 %v1159
        %1198 = vmatpush.msra.mxu0 %v1158
        %1199 = vmatpush.msra.mxu0 %v1157
        %1200 = vmatpush.msra.mxu0 %v1156
        %1201 = vmatpush.msra.mxu0 %v1155
        %1202 = vmatpush.msra.mxu0 %v1154
        %1203 = vmatpush.msra.mxu0 %v1153
        %1204 = vmatpush.msra.mxu0 %v1152
        %1205 = vmatpush.msra.mxu0 %v1151
        %1206 = vmatpush.msra.mxu0 %v1150
        %1207 = vmatmul.f32.gmra.mxu0 %v1168
        %v1208 = vpop.f32.mrf.mxu0
        %v1209 = vadd.f32 %v1189, %v1208
        %1210 = vdwg.mxu0
        %s1211 = scalar_lea.vmem %s2, 64
        %v1212 = vld [vmem:[%s1211] sm:$0xff]
        %v1214 = vsel %vm437, %v1212, 0
        %v1217 = vsel %vm441, %v1209, 0
        %1219 = vmatpush.msra.mxu0 0.0
        %1220 = vmatpush.msra.mxu0 0.0
        %1221 = vmatpush.msra.mxu0 0.0
        %1222 = vmatpush.msra.mxu0 0.0
        %1223 = vmatpush.msra.mxu0 0.0
        %1224 = vmatpush.msra.mxu0 0.0
        %1225 = vmatpush.msra.mxu0 0.0
        %1226 = vmatpush.msra.mxu0 0.0
        %1227 = vmatpush.msra.mxu0 0.0
        %1228 = vmatpush.msra.mxu0 0.0
        %1229 = vmatpush.msra.mxu0 0.0
        %1230 = vmatpush.msra.mxu0 0.0
        %1231 = vmatpush.msra.mxu0 0.0
        %1232 = vmatpush.msra.mxu0 0.0
        %1233 = vmatpush.msra.mxu0 0.0
        %1234 = vmatpush.msra.mxu0 %v1217
        %1235 = vmatmul.f32.gmra.mxu0 %v1214
        %v1236 = vpop.f32.mrf.mxu0
        %v1237 = vadd.f32 0.0, %v1236
        %1238 = vdwg.mxu0
        %v1239 = vadd.f32 %v1132, %v1237
        %v1240 = vld [vmem:[%s3] sm:$0xff]
        %v1241 = vadd.f32 %v1239, %v1240
        %v1242 = vmax.f32 %v1241, 0.0
        %v1243 = vld [vmem:[%s4] sm:$0xff]
        %v1244 = vld [vmem:[%s4 + $0x8] sm:$0xff]
        %v1245 = vld [vmem:[%s4 + $0x10] sm:$0xff]
        %v1246 = vld [vmem:[%s4 + $0x18] sm:$0xff]
        %v1247 = vld [vmem:[%s4 + $0x20] sm:$0xff]
        %v1248 = vld [vmem:[%s4 + $0x28] sm:$0xff]
        %v1249 = vld [vmem:[%s4 + $0x30] sm:$0xff]
        %v1250 = vld [vmem:[%s4 + $0x38] sm:$0xff]
        %vm1251 = vcmask 523264
        %v1253 = vsel %vm1251, %v1242, 0
        %1255 = vmatpush.msra.mxu0 0.0
        %1256 = vmatpush.msra.mxu0 0.0
        %1257 = vmatpush.msra.mxu0 0.0
        %1258 = vmatpush.msra.mxu0 0.0
        %1259 = vmatpush.msra.mxu0 0.0
        %1260 = vmatpush.msra.mxu0 0.0
        %1261 = vmatpush.msra.mxu0 0.0
        %1262 = vmatpush.msra.mxu0 0.0
        %1263 = vmatpush.msra.mxu0 %v1250
        %1264 = vmatpush.msra.mxu0 %v1249
        %1265 = vmatpush.msra.mxu0 %v1248
        %1266 = vmatpush.msra.mxu0 %v1247
        %1267 = vmatpush.msra.mxu0 %v1246
        %1268 = vmatpush.msra.mxu0 %v1245
        %1269 = vmatpush.msra.mxu0 %v1244
        %1270 = vmatpush.msra.mxu0 %v1243
        %1271 = vmatmul.f32.gmra.mxu0 %v1253
        %v1272 = vpop.f32.mrf.mxu0
        %v1273 = vadd.f32 0.0, %v1272
        %1274 = vdwg.mxu0
        %v1275 = vld [vmem:[%s5] sm:$0xff]
        %v1276 = vld [vmem:[%s5 + $0x8] sm:$0xff]
        %s1277 = scalar_lea.vmem %s4, 64
        %v1278 = vld [vmem:[%s1277] sm:$0xff]
        %v1279 = vld [vmem:[%s1277 + $0x8] sm:$0xff]
        %v1280 = vld [vmem:[%s1277 + $0x10] sm:$0xff]
        %v1281 = vld [vmem:[%s1277 + $0x18] sm:$0xff]
        %v1282 = vld [vmem:[%s1277 + $0x20] sm:$0xff]
        %v1283 = vld [vmem:[%s1277 + $0x28] sm:$0xff]
        %v1284 = vld [vmem:[%s1277 + $0x30] sm:$0xff]
        %v1285 = vld [vmem:[%s1277 + $0x38] sm:$0xff]
        %1286 = vmatpush.msra.mxu0 0.0
        %1287 = vmatpush.msra.mxu0 0.0
        %1288 = vmatpush.msra.mxu0 0.0
        %1289 = vmatpush.msra.mxu0 0.0
        %1290 = vmatpush.msra.mxu0 0.0
        %1291 = vmatpush.msra.mxu0 0.0
        %1292 = vmatpush.msra.mxu0 0.0
        %1293 = vmatpush.msra.mxu0 0.0
        %1294 = vmatpush.msra.mxu0 %v1285
        %1295 = vmatpush.msra.mxu0 %v1284
        %1296 = vmatpush.msra.mxu0 %v1283
        %1297 = vmatpush.msra.mxu0 %v1282
        %1298 = vmatpush.msra.mxu0 %v1281
        %1299 = vmatpush.msra.mxu0 %v1280
        %1300 = vmatpush.msra.mxu0 %v1279
        %1301 = vmatpush.msra.mxu0 %v1278
        %1302 = vmatmul.f32.gmra.mxu0 %v1253
        %v1303 = vpop.f32.mrf.mxu0
        %v1304 = vadd.f32 0.0, %v1303
        %1305 = vdwg.mxu0
        %s1306 = scalar_lea.vmem %s5, 16
        %v1307 = vld [vmem:[%s1306] sm:$0xff]
        %v1308 = vld [vmem:[%s1306 + $0x8] sm:$0xff]
        %vm1309 = vcmask 64512
        %v1311 = vsel %vm1309, %v1307, 0
        %v1314 = vsel %vm1309, %v1308, 0
        %1316 = vmatpush.msra.mxu0 0.0
        %1317 = vmatpush.msra.mxu0 0.0
        %1318 = vmatpush.msra.mxu0 0.0
        %1319 = vmatpush.msra.mxu0 0.0
        %1320 = vmatpush.msra.mxu0 0.0
        %1321 = vmatpush.msra.mxu0 0.0
        %1322 = vmatpush.msra.mxu0 0.0
        %1323 = vmatpush.msra.mxu0 0.0
        %1324 = vmatpush.msra.mxu0 0.0
        %1325 = vmatpush.msra.mxu0 0.0
        %1326 = vmatpush.msra.mxu0 0.0
        %1327 = vmatpush.msra.mxu0 0.0
        %1328 = vmatpush.msra.mxu0 0.0
        %1329 = vmatpush.msra.mxu0 0.0
        %1330 = vmatpush.msra.mxu0 0.0
        %1331 = vmatpush.msra.mxu0 %v1304
        %1332 = vmatmul.f32.gmra.mxu0 %v1311
        %v1333 = vpop.f32.mrf.mxu0
        %v1334 = vadd.f32 0.0, %v1333
        %1335 = vmatmul.f32.gmra.mxu0 %v1314
        %v1336 = vpop.f32.mrf.mxu0
        %v1337 = vadd.f32 0.0, %v1336
        %1338 = vdwg.mxu0
        %v1340 = vsel %vm1309, %v1275, 0
        %v1343 = vsel %vm1309, %v1276, 0
        %1345 = vmatpush.msra.mxu0 0.0
        %1346 = vmatpush.msra.mxu0 0.0
        %1347 = vmatpush.msra.mxu0 0.0
        %1348 = vmatpush.msra.mxu0 0.0
        %1349 = vmatpush.msra.mxu0 0.0
        %1350 = vmatpush.msra.mxu0 0.0
        %1351 = vmatpush.msra.mxu0 0.0
        %1352 = vmatpush.msra.mxu0 0.0
        %1353 = vmatpush.msra.mxu0 0.0
        %1354 = vmatpush.msra.mxu0 0.0
        %1355 = vmatpush.msra.mxu0 0.0
        %1356 = vmatpush.msra.mxu0 0.0
        %1357 = vmatpush.msra.mxu0 0.0
        %1358 = vmatpush.msra.mxu0 0.0
        %1359 = vmatpush.msra.mxu0 0.0
        %1360 = vmatpush.msra.mxu0 %v1273
        %1361 = vmatmul.f32.gmra.mxu0 %v1340
        %v1362 = vpop.f32.mrf.mxu0
        %v1363 = vadd.f32 %v1334, %v1362
        %1364 = vmatmul.f32.gmra.mxu0 %v1343
        %v1365 = vpop.f32.mrf.mxu0
        %v1366 = vadd.f32 %v1337, %v1365
        %1367 = vdwg.mxu0
        %s1368 = scalar_lea.vmem %s4, 128
        %v1369 = vld [vmem:[%s1368] sm:$0xff]
        %v1370 = vld [vmem:[%s1368 + $0x8] sm:$0xff]
        %v1371 = vld [vmem:[%s1368 + $0x10] sm:$0xff]
        %v1372 = vld [vmem:[%s1368 + $0x18] sm:$0xff]
        %v1373 = vld [vmem:[%s1368 + $0x20] sm:$0xff]
        %v1374 = vld [vmem:[%s1368 + $0x28] sm:$0xff]
        %v1375 = vld [vmem:[%s1368 + $0x30] sm:$0xff]
        %v1376 = vld [vmem:[%s1368 + $0x38] sm:$0xff]
        %1377 = vmatpush.msra.mxu0 0.0
        %1378 = vmatpush.msra.mxu0 0.0
        %1379 = vmatpush.msra.mxu0 0.0
        %1380 = vmatpush.msra.mxu0 0.0
        %1381 = vmatpush.msra.mxu0 0.0
        %1382 = vmatpush.msra.mxu0 0.0
        %1383 = vmatpush.msra.mxu0 0.0
        %1384 = vmatpush.msra.mxu0 0.0
        %1385 = vmatpush.msra.mxu0 %v1376
        %1386 = vmatpush.msra.mxu0 %v1375
        %1387 = vmatpush.msra.mxu0 %v1374
        %1388 = vmatpush.msra.mxu0 %v1373
        %1389 = vmatpush.msra.mxu0 %v1372
        %1390 = vmatpush.msra.mxu0 %v1371
        %1391 = vmatpush.msra.mxu0 %v1370
        %1392 = vmatpush.msra.mxu0 %v1369
        %1393 = vmatmul.f32.gmra.mxu0 %v1253
        %v1394 = vpop.f32.mrf.mxu0
        %v1395 = vadd.f32 0.0, %v1394
        %1396 = vdwg.mxu0
        %s1397 = scalar_lea.vmem %s5, 32
        %v1398 = vld [vmem:[%s1397] sm:$0xff]
        %v1399 = vld [vmem:[%s1397 + $0x8] sm:$0xff]
        %v1401 = vsel %vm1309, %v1398, 0
        %v1404 = vsel %vm1309, %v1399, 0
        %1406 = vmatpush.msra.mxu0 0.0
        %1407 = vmatpush.msra.mxu0 0.0
        %1408 = vmatpush.msra.mxu0 0.0
        %1409 = vmatpush.msra.mxu0 0.0
        %1410 = vmatpush.msra.mxu0 0.0
        %1411 = vmatpush.msra.mxu0 0.0
        %1412 = vmatpush.msra.mxu0 0.0
        %1413 = vmatpush.msra.mxu0 0.0
        %1414 = vmatpush.msra.mxu0 0.0
        %1415 = vmatpush.msra.mxu0 0.0
        %1416 = vmatpush.msra.mxu0 0.0
        %1417 = vmatpush.msra.mxu0 0.0
        %1418 = vmatpush.msra.mxu0 0.0
        %1419 = vmatpush.msra.mxu0 0.0
        %1420 = vmatpush.msra.mxu0 0.0
        %1421 = vmatpush.msra.mxu0 %v1395
        %1422 = vmatmul.f32.gmra.mxu0 %v1401
        %v1423 = vpop.f32.mrf.mxu0
        %v1424 = vadd.f32 0.0, %v1423
        %1425 = vmatmul.f32.gmra.mxu0 %v1404
        %v1426 = vpop.f32.mrf.mxu0
        %v1427 = vadd.f32 0.0, %v1426
        %1428 = vdwg.mxu0
        %v1429 = vadd.f32 %v1363, %v1424
        %v1430 = vadd.f32 %v1366, %v1427
        %s1431 = scalar_lea.vmem %s4, 192
        %v1432 = vld [vmem:[%s1431] sm:$0xff]
        %v1433 = vld [vmem:[%s1431 + $0x8] sm:$0xff]
        %v1434 = vld [vmem:[%s1431 + $0x10] sm:$0xff]
        %v1435 = vld [vmem:[%s1431 + $0x18] sm:$0xff]
        %v1436 = vld [vmem:[%s1431 + $0x20] sm:$0xff]
        %v1437 = vld [vmem:[%s1431 + $0x28] sm:$0xff]
        %v1438 = vld [vmem:[%s1431 + $0x30] sm:$0xff]
        %v1439 = vld [vmem:[%s1431 + $0x38] sm:$0xff]
        %1440 = vmatpush.msra.mxu0 0.0
        %1441 = vmatpush.msra.mxu0 0.0
        %1442 = vmatpush.msra.mxu0 0.0
        %1443 = vmatpush.msra.mxu0 0.0
        %1444 = vmatpush.msra.mxu0 0.0
        %1445 = vmatpush.msra.mxu0 0.0
        %1446 = vmatpush.msra.mxu0 0.0
        %1447 = vmatpush.msra.mxu0 0.0
        %1448 = vmatpush.msra.mxu0 %v1439
        %1449 = vmatpush.msra.mxu0 %v1438
        %1450 = vmatpush.msra.mxu0 %v1437
        %1451 = vmatpush.msra.mxu0 %v1436
        %1452 = vmatpush.msra.mxu0 %v1435
        %1453 = vmatpush.msra.mxu0 %v1434
        %1454 = vmatpush.msra.mxu0 %v1433
        %1455 = vmatpush.msra.mxu0 %v1432
        %1456 = vmatmul.f32.gmra.mxu0 %v1253
        %v1457 = vpop.f32.mrf.mxu0
        %v1458 = vadd.f32 0.0, %v1457
        %1459 = vdwg.mxu0
        %s1460 = scalar_lea.vmem %s5, 48
        %v1461 = vld [vmem:[%s1460] sm:$0xff]
        %v1462 = vld [vmem:[%s1460 + $0x8] sm:$0xff]
        %v1464 = vsel %vm1309, %v1461, 0
        %v1467 = vsel %vm1309, %v1462, 0
        %1469 = vmatpush.msra.mxu0 0.0
        %1470 = vmatpush.msra.mxu0 0.0
        %1471 = vmatpush.msra.mxu0 0.0
        %1472 = vmatpush.msra.mxu0 0.0
        %1473 = vmatpush.msra.mxu0 0.0
        %1474 = vmatpush.msra.mxu0 0.0
        %1475 = vmatpush.msra.mxu0 0.0
        %1476 = vmatpush.msra.mxu0 0.0
        %1477 = vmatpush.msra.mxu0 0.0
        %1478 = vmatpush.msra.mxu0 0.0
        %1479 = vmatpush.msra.mxu0 0.0
        %1480 = vmatpush.msra.mxu0 0.0
        %1481 = vmatpush.msra.mxu0 0.0
        %1482 = vmatpush.msra.mxu0 0.0
        %1483 = vmatpush.msra.mxu0 0.0
        %1484 = vmatpush.msra.mxu0 %v1458
        %1485 = vmatmul.f32.gmra.mxu0 %v1464
        %v1486 = vpop.f32.mrf.mxu0
        %v1487 = vadd.f32 0.0, %v1486
        %1488 = vmatmul.f32.gmra.mxu0 %v1467
        %v1489 = vpop.f32.mrf.mxu0
        %v1490 = vadd.f32 0.0, %v1489
        %1491 = vdwg.mxu0
        %v1492 = vadd.f32 %v1429, %v1487
        %v1493 = vadd.f32 %v1430, %v1490
        %s1494 = scalar_lea.vmem %s4, 256
        %v1495 = vld [vmem:[%s1494] sm:$0xff]
        %v1496 = vld [vmem:[%s1494 + $0x8] sm:$0xff]
        %v1497 = vld [vmem:[%s1494 + $0x10] sm:$0xff]
        %v1498 = vld [vmem:[%s1494 + $0x18] sm:$0xff]
        %v1499 = vld [vmem:[%s1494 + $0x20] sm:$0xff]
        %v1500 = vld [vmem:[%s1494 + $0x28] sm:$0xff]
        %v1501 = vld [vmem:[%s1494 + $0x30] sm:$0xff]
        %v1502 = vld [vmem:[%s1494 + $0x38] sm:$0xff]
        %1503 = vmatpush.msra.mxu0 0.0
        %1504 = vmatpush.msra.mxu0 0.0
        %1505 = vmatpush.msra.mxu0 0.0
        %1506 = vmatpush.msra.mxu0 0.0
        %1507 = vmatpush.msra.mxu0 0.0
        %1508 = vmatpush.msra.mxu0 0.0
        %1509 = vmatpush.msra.mxu0 0.0
        %1510 = vmatpush.msra.mxu0 0.0
        %1511 = vmatpush.msra.mxu0 %v1502
        %1512 = vmatpush.msra.mxu0 %v1501
        %1513 = vmatpush.msra.mxu0 %v1500
        %1514 = vmatpush.msra.mxu0 %v1499
        %1515 = vmatpush.msra.mxu0 %v1498
        %1516 = vmatpush.msra.mxu0 %v1497
        %1517 = vmatpush.msra.mxu0 %v1496
        %1518 = vmatpush.msra.mxu0 %v1495
        %1519 = vmatmul.f32.gmra.mxu0 %v1253
        %v1520 = vpop.f32.mrf.mxu0
        %v1521 = vadd.f32 0.0, %v1520
        %1522 = vdwg.mxu0
        %s1523 = scalar_lea.vmem %s5, 64
        %v1524 = vld [vmem:[%s1523] sm:$0xff]
        %v1525 = vld [vmem:[%s1523 + $0x8] sm:$0xff]
        %v1527 = vsel %vm1309, %v1524, 0
        %v1530 = vsel %vm1309, %v1525, 0
        %1532 = vmatpush.msra.mxu0 0.0
        %1533 = vmatpush.msra.mxu0 0.0
        %1534 = vmatpush.msra.mxu0 0.0
        %1535 = vmatpush.msra.mxu0 0.0
        %1536 = vmatpush.msra.mxu0 0.0
        %1537 = vmatpush.msra.mxu0 0.0
        %1538 = vmatpush.msra.mxu0 0.0
        %1539 = vmatpush.msra.mxu0 0.0
        %1540 = vmatpush.msra.mxu0 0.0
        %1541 = vmatpush.msra.mxu0 0.0
        %1542 = vmatpush.msra.mxu0 0.0
        %1543 = vmatpush.msra.mxu0 0.0
        %1544 = vmatpush.msra.mxu0 0.0
        %1545 = vmatpush.msra.mxu0 0.0
        %1546 = vmatpush.msra.mxu0 0.0
        %1547 = vmatpush.msra.mxu0 %v1521
        %1548 = vmatmul.f32.gmra.mxu0 %v1527
        %v1549 = vpop.f32.mrf.mxu0
        %v1550 = vadd.f32 0.0, %v1549
        %1551 = vmatmul.f32.gmra.mxu0 %v1530
        %v1552 = vpop.f32.mrf.mxu0
        %v1553 = vadd.f32 0.0, %v1552
        %1554 = vdwg.mxu0
        %v1555 = vadd.f32 %v1492, %v1550
        %v1556 = vadd.f32 %v1493, %v1553
        %s1557 = scalar_lea.vmem %s4, 320
        %v1558 = vld [vmem:[%s1557] sm:$0xff]
        %v1559 = vld [vmem:[%s1557 + $0x8] sm:$0xff]
        %v1560 = vld [vmem:[%s1557 + $0x10] sm:$0xff]
        %v1561 = vld [vmem:[%s1557 + $0x18] sm:$0xff]
        %v1562 = vld [vmem:[%s1557 + $0x20] sm:$0xff]
        %v1563 = vld [vmem:[%s1557 + $0x28] sm:$0xff]
        %v1564 = vld [vmem:[%s1557 + $0x30] sm:$0xff]
        %v1565 = vld [vmem:[%s1557 + $0x38] sm:$0xff]
        %1566 = vmatpush.msra.mxu0 0.0
        %1567 = vmatpush.msra.mxu0 0.0
        %1568 = vmatpush.msra.mxu0 0.0
        %1569 = vmatpush.msra.mxu0 0.0
        %1570 = vmatpush.msra.mxu0 0.0
        %1571 = vmatpush.msra.mxu0 0.0
        %1572 = vmatpush.msra.mxu0 0.0
        %1573 = vmatpush.msra.mxu0 0.0
        %1574 = vmatpush.msra.mxu0 %v1565
        %1575 = vmatpush.msra.mxu0 %v1564
        %1576 = vmatpush.msra.mxu0 %v1563
        %1577 = vmatpush.msra.mxu0 %v1562
        %1578 = vmatpush.msra.mxu0 %v1561
        %1579 = vmatpush.msra.mxu0 %v1560
        %1580 = vmatpush.msra.mxu0 %v1559
        %1581 = vmatpush.msra.mxu0 %v1558
        %1582 = vmatmul.f32.gmra.mxu0 %v1253
        %v1583 = vpop.f32.mrf.mxu0
        %v1584 = vadd.f32 0.0, %v1583
        %1585 = vdwg.mxu0
        %s1586 = scalar_lea.vmem %s5, 80
        %v1587 = vld [vmem:[%s1586] sm:$0xff]
        %v1588 = vld [vmem:[%s1586 + $0x8] sm:$0xff]
        %v1590 = vsel %vm1309, %v1587, 0
        %v1593 = vsel %vm1309, %v1588, 0
        %1595 = vmatpush.msra.mxu0 0.0
        %1596 = vmatpush.msra.mxu0 0.0
        %1597 = vmatpush.msra.mxu0 0.0
        %1598 = vmatpush.msra.mxu0 0.0
        %1599 = vmatpush.msra.mxu0 0.0
        %1600 = vmatpush.msra.mxu0 0.0
        %1601 = vmatpush.msra.mxu0 0.0
        %1602 = vmatpush.msra.mxu0 0.0
        %1603 = vmatpush.msra.mxu0 0.0
        %1604 = vmatpush.msra.mxu0 0.0
        %1605 = vmatpush.msra.mxu0 0.0
        %1606 = vmatpush.msra.mxu0 0.0
        %1607 = vmatpush.msra.mxu0 0.0
        %1608 = vmatpush.msra.mxu0 0.0
        %1609 = vmatpush.msra.mxu0 0.0
        %1610 = vmatpush.msra.mxu0 %v1584
        %1611 = vmatmul.f32.gmra.mxu0 %v1590
        %v1612 = vpop.f32.mrf.mxu0
        %v1613 = vadd.f32 0.0, %v1612
        %1614 = vmatmul.f32.gmra.mxu0 %v1593
        %v1615 = vpop.f32.mrf.mxu0
        %v1616 = vadd.f32 0.0, %v1615
        %1617 = vdwg.mxu0
        %v1618 = vadd.f32 %v1555, %v1613
        %v1619 = vadd.f32 %v1556, %v1616
        %s1620 = scalar_lea.vmem %s4, 384
        %v1621 = vld [vmem:[%s1620] sm:$0xff]
        %v1622 = vld [vmem:[%s1620 + $0x8] sm:$0xff]
        %v1623 = vld [vmem:[%s1620 + $0x10] sm:$0xff]
        %v1624 = vld [vmem:[%s1620 + $0x18] sm:$0xff]
        %v1625 = vld [vmem:[%s1620 + $0x20] sm:$0xff]
        %v1626 = vld [vmem:[%s1620 + $0x28] sm:$0xff]
        %v1627 = vld [vmem:[%s1620 + $0x30] sm:$0xff]
        %v1628 = vld [vmem:[%s1620 + $0x38] sm:$0xff]
        %1629 = vmatpush.msra.mxu0 0.0
        %1630 = vmatpush.msra.mxu0 0.0
        %1631 = vmatpush.msra.mxu0 0.0
        %1632 = vmatpush.msra.mxu0 0.0
        %1633 = vmatpush.msra.mxu0 0.0
        %1634 = vmatpush.msra.mxu0 0.0
        %1635 = vmatpush.msra.mxu0 0.0
        %1636 = vmatpush.msra.mxu0 0.0
        %1637 = vmatpush.msra.mxu0 %v1628
        %1638 = vmatpush.msra.mxu0 %v1627
        %1639 = vmatpush.msra.mxu0 %v1626
        %1640 = vmatpush.msra.mxu0 %v1625
        %1641 = vmatpush.msra.mxu0 %v1624
        %1642 = vmatpush.msra.mxu0 %v1623
        %1643 = vmatpush.msra.mxu0 %v1622
        %1644 = vmatpush.msra.mxu0 %v1621
        %1645 = vmatmul.f32.gmra.mxu0 %v1253
        %v1646 = vpop.f32.mrf.mxu0
        %v1647 = vadd.f32 0.0, %v1646
        %1648 = vdwg.mxu0
        %s1649 = scalar_lea.vmem %s5, 96
        %v1650 = vld [vmem:[%s1649] sm:$0xff]
        %v1651 = vld [vmem:[%s1649 + $0x8] sm:$0xff]
        %v1653 = vsel %vm1309, %v1650, 0
        %v1656 = vsel %vm1309, %v1651, 0
        %1658 = vmatpush.msra.mxu0 0.0
        %1659 = vmatpush.msra.mxu0 0.0
        %1660 = vmatpush.msra.mxu0 0.0
        %1661 = vmatpush.msra.mxu0 0.0
        %1662 = vmatpush.msra.mxu0 0.0
        %1663 = vmatpush.msra.mxu0 0.0
        %1664 = vmatpush.msra.mxu0 0.0
        %1665 = vmatpush.msra.mxu0 0.0
        %1666 = vmatpush.msra.mxu0 0.0
        %1667 = vmatpush.msra.mxu0 0.0
        %1668 = vmatpush.msra.mxu0 0.0
        %1669 = vmatpush.msra.mxu0 0.0
        %1670 = vmatpush.msra.mxu0 0.0
        %1671 = vmatpush.msra.mxu0 0.0
        %1672 = vmatpush.msra.mxu0 0.0
        %1673 = vmatpush.msra.mxu0 %v1647
        %1674 = vmatmul.f32.gmra.mxu0 %v1653
        %v1675 = vpop.f32.mrf.mxu0
        %v1676 = vadd.f32 0.0, %v1675
        %1677 = vmatmul.f32.gmra.mxu0 %v1656
        %v1678 = vpop.f32.mrf.mxu0
        %v1679 = vadd.f32 0.0, %v1678
        %1680 = vdwg.mxu0
        %v1681 = vadd.f32 %v1618, %v1676
        %v1682 = vadd.f32 %v1619, %v1679
        %s1683 = scalar_lea.vmem %s4, 448
        %v1684 = vld [vmem:[%s1683] sm:$0xff]
        %v1685 = vld [vmem:[%s1683 + $0x8] sm:$0xff]
        %v1686 = vld [vmem:[%s1683 + $0x10] sm:$0xff]
        %v1687 = vld [vmem:[%s1683 + $0x18] sm:$0xff]
        %v1688 = vld [vmem:[%s1683 + $0x20] sm:$0xff]
        %v1689 = vld [vmem:[%s1683 + $0x28] sm:$0xff]
        %v1690 = vld [vmem:[%s1683 + $0x30] sm:$0xff]
        %v1691 = vld [vmem:[%s1683 + $0x38] sm:$0xff]
        %1692 = vmatpush.msra.mxu0 0.0
        %1693 = vmatpush.msra.mxu0 0.0
        %1694 = vmatpush.msra.mxu0 0.0
        %1695 = vmatpush.msra.mxu0 0.0
        %1696 = vmatpush.msra.mxu0 0.0
        %1697 = vmatpush.msra.mxu0 0.0
        %1698 = vmatpush.msra.mxu0 0.0
        %1699 = vmatpush.msra.mxu0 0.0
        %1700 = vmatpush.msra.mxu0 %v1691
        %1701 = vmatpush.msra.mxu0 %v1690
        %1702 = vmatpush.msra.mxu0 %v1689
        %1703 = vmatpush.msra.mxu0 %v1688
        %1704 = vmatpush.msra.mxu0 %v1687
        %1705 = vmatpush.msra.mxu0 %v1686
        %1706 = vmatpush.msra.mxu0 %v1685
        %1707 = vmatpush.msra.mxu0 %v1684
        %1708 = vmatmul.f32.gmra.mxu0 %v1253
        %v1709 = vpop.f32.mrf.mxu0
        %v1710 = vadd.f32 0.0, %v1709
        %1711 = vdwg.mxu0
        %s1712 = scalar_lea.vmem %s5, 112
        %v1713 = vld [vmem:[%s1712] sm:$0xff]
        %v1714 = vld [vmem:[%s1712 + $0x8] sm:$0xff]
        %v1716 = vsel %vm1309, %v1713, 0
        %v1719 = vsel %vm1309, %v1714, 0
        %1721 = vmatpush.msra.mxu0 0.0
        %1722 = vmatpush.msra.mxu0 0.0
        %1723 = vmatpush.msra.mxu0 0.0
        %1724 = vmatpush.msra.mxu0 0.0
        %1725 = vmatpush.msra.mxu0 0.0
        %1726 = vmatpush.msra.mxu0 0.0
        %1727 = vmatpush.msra.mxu0 0.0
        %1728 = vmatpush.msra.mxu0 0.0
        %1729 = vmatpush.msra.mxu0 0.0
        %1730 = vmatpush.msra.mxu0 0.0
        %1731 = vmatpush.msra.mxu0 0.0
        %1732 = vmatpush.msra.mxu0 0.0
        %1733 = vmatpush.msra.mxu0 0.0
        %1734 = vmatpush.msra.mxu0 0.0
        %1735 = vmatpush.msra.mxu0 0.0
        %1736 = vmatpush.msra.mxu0 %v1710
        %1737 = vmatmul.f32.gmra.mxu0 %v1716
        %v1738 = vpop.f32.mrf.mxu0
        %v1739 = vadd.f32 0.0, %v1738
        %1740 = vmatmul.f32.gmra.mxu0 %v1719
        %v1741 = vpop.f32.mrf.mxu0
        %v1742 = vadd.f32 0.0, %v1741
        %1743 = vdwg.mxu0
        %v1744 = vadd.f32 %v1681, %v1739
        %v1745 = vadd.f32 %v1682, %v1742
        %s1746 = scalar_lea.vmem %s4, 512
        %v1747 = vld [vmem:[%s1746] sm:$0xff]
        %v1748 = vld [vmem:[%s1746 + $0x8] sm:$0xff]
        %v1749 = vld [vmem:[%s1746 + $0x10] sm:$0xff]
        %v1750 = vld [vmem:[%s1746 + $0x18] sm:$0xff]
        %v1751 = vld [vmem:[%s1746 + $0x20] sm:$0xff]
        %v1752 = vld [vmem:[%s1746 + $0x28] sm:$0xff]
        %v1753 = vld [vmem:[%s1746 + $0x30] sm:$0xff]
        %v1754 = vld [vmem:[%s1746 + $0x38] sm:$0xff]
        %1755 = vmatpush.msra.mxu0 0.0
        %1756 = vmatpush.msra.mxu0 0.0
        %1757 = vmatpush.msra.mxu0 0.0
        %1758 = vmatpush.msra.mxu0 0.0
        %1759 = vmatpush.msra.mxu0 0.0
        %1760 = vmatpush.msra.mxu0 0.0
        %1761 = vmatpush.msra.mxu0 0.0
        %1762 = vmatpush.msra.mxu0 0.0
        %1763 = vmatpush.msra.mxu0 %v1754
        %1764 = vmatpush.msra.mxu0 %v1753
        %1765 = vmatpush.msra.mxu0 %v1752
        %1766 = vmatpush.msra.mxu0 %v1751
        %1767 = vmatpush.msra.mxu0 %v1750
        %1768 = vmatpush.msra.mxu0 %v1749
        %1769 = vmatpush.msra.mxu0 %v1748
        %1770 = vmatpush.msra.mxu0 %v1747
        %1771 = vmatmul.f32.gmra.mxu0 %v1253
        %v1772 = vpop.f32.mrf.mxu0
        %v1773 = vadd.f32 0.0, %v1772
        %1774 = vdwg.mxu0
        %s1775 = scalar_lea.vmem %s5, 128
        %v1776 = vld [vmem:[%s1775] sm:$0xff]
        %v1777 = vld [vmem:[%s1775 + $0x8] sm:$0xff]
        %v1779 = vsel %vm1309, %v1776, 0
        %v1782 = vsel %vm1309, %v1777, 0
        %1784 = vmatpush.msra.mxu0 0.0
        %1785 = vmatpush.msra.mxu0 0.0
        %1786 = vmatpush.msra.mxu0 0.0
        %1787 = vmatpush.msra.mxu0 0.0
        %1788 = vmatpush.msra.mxu0 0.0
        %1789 = vmatpush.msra.mxu0 0.0
        %1790 = vmatpush.msra.mxu0 0.0
        %1791 = vmatpush.msra.mxu0 0.0
        %1792 = vmatpush.msra.mxu0 0.0
        %1793 = vmatpush.msra.mxu0 0.0
        %1794 = vmatpush.msra.mxu0 0.0
        %1795 = vmatpush.msra.mxu0 0.0
        %1796 = vmatpush.msra.mxu0 0.0
        %1797 = vmatpush.msra.mxu0 0.0
        %1798 = vmatpush.msra.mxu0 0.0
        %1799 = vmatpush.msra.mxu0 %v1773
        %1800 = vmatmul.f32.gmra.mxu0 %v1779
        %v1801 = vpop.f32.mrf.mxu0
        %v1802 = vadd.f32 0.0, %v1801
        %1803 = vmatmul.f32.gmra.mxu0 %v1782
        %v1804 = vpop.f32.mrf.mxu0
        %v1805 = vadd.f32 0.0, %v1804
        %1806 = vdwg.mxu0
        %v1807 = vadd.f32 %v1744, %v1802
        %v1808 = vadd.f32 %v1745, %v1805
        %v1809 = vld [vmem:[%s6] sm:$0xff]
        %v1810 = vld [vmem:[%s6 + $0x8] sm:$0xff]
        %v1811 = vadd.f32 %v1807, %v1809
        %v1812 = vadd.f32 %v1808, %v1810
        %v1813 = vmax.f32 %v1811, 0.0
        %v1814 = vmax.f32 %v1812, 0.0
        %vm1815 = vcmask 130048
        %1816 = vst.msk [vmem:[%s271] sm:$0xff] %vm1815, %v1813
        %1817 = vst.msk [vmem:[%s271 + $0x8] sm:$0xff] %vm1815, %v1814
        %s1818 = sand.u32 %s181, 1
        %s1819 = scalar_lea.sflag [#allocation3], %s1818
        %s1820 = sand.u32 %s181, 1
        %s1821 = smul.addr %s1820, 16
        %s1822 = scalar_lea.vmem [#allocation2], %s1821
        // Predicated region
        $region49: #{tpu_custom_call.1} parent=47 // pred_check
          %p1823 = pneg %p191
        $region50: #{tpu_custom_call.1} parent=47 // pred_check_branch
          %1825 = sbr.rel (%p1823) target = $region52
        $region51: #{tpu_custom_call.1} parent=47 // pred_region
          %1827 = vsyncadd %s1819, 0
          %s1828 = smul.addr %s21, 2
          %s1829 = smul.addr %s1828, 8
          %s1830 = scalar_lea.hbm %s7, %s1829
          %s1831 = sshll.u32 %s1822, 4
          %s1832 = int_to_ptr.vmem [resolvable:$true] %s1831
          %s1833 = sshll.u32 %s1830, 4
          %s1834 = int_to_ptr.hbm [resolvable:$true] %s1833
          %1839 = dma.vmem_to_hbm [thread:$0]  %s1832, 256, %s1834, %s1819, 128, 128, 8
        $region52: #{tpu_custom_call.1} parent=47 // pred_fallthru
          _
      $region48: #{tpu_custom_call.1} parent=5 // pred_fallthru
        _
      %p1840 = scmp.le.s32.totalorder 2, %s16
      // Predicated region
      $region53: #{tpu_custom_call.1} parent=5 // pred_check
        %p1841 = pneg %p1840
      $region54: #{tpu_custom_call.1} parent=5 // pred_check_branch
        %1843 = sbr.rel (%p1841) target = $region56
      $region55: #{tpu_custom_call.1} parent=5 // pred_region
        %s1844 = ssub.s32 %s16, 2
        // Predicated region
        $region57: #{tpu_custom_call.1} parent=55 // pred_check
          %p1845 = pneg %p197
        $region58: #{tpu_custom_call.1} parent=55 // pred_check_branch
          %1847 = sbr.rel (%p1845) target = $region60
        $region59: #{tpu_custom_call.1} parent=55 // pred_region
          %s1848 = sand.u32 %s182, 1
          %s1849 = scalar_lea.sflag [#allocation3], %s1848
          %s1850 = sand.u32 %s182, 1
          %s1851 = smul.addr %s1850, 16
          %s1852 = scalar_lea.vmem [#allocation2], %s1851
          %1854 = dma.done %s1849, 256
        $region60: #{tpu_custom_call.1} parent=55 // pred_fallthru
          _
      $region56: #{tpu_custom_call.1} parent=5 // pred_fallthru
        _
    $region6: #{tpu_custom_call.1} parent=1 // loop_footer
      %s20 = sadd.s32 1, %s16
    $region7: #{tpu_custom_call.1} parent=1 // loop_footer_branch
      %15 = sbr.rel target = $region3
    $region8: #{tpu_custom_call.1} parent=1 // loop_exit
      _
    %1855 = vsyncpa [#allocation3], 1
    %s1856 = scalar_lea.sflag [#allocation3], 1
    %1857 = vsyncpa %s1856, 1

</llo_original>
